<compile_context>
chip_gen: v5e
topology: v5e:2x2
jax: 0.10.0
libtpu: 0.0.40
codegen_flags: <defaults>
</compile_context>

<pallas_src>
import jax
import jax.numpy as jnp
import numpy as np
from jax.experimental import pallas as pl
from jax.experimental.pallas import tpu as pltpu

LAYER_DIMS = [60, 120, 240, 480, 100, 50, 20, 2]  # 7 Linear layers
NUM_LAYERS = len(LAYER_DIMS) - 1
OUT_PAD = 128  # lane-dense padded width of the final layer


def _round_up(v, m):
    return ((v + m - 1) // m) * m


def mlp_kernel(x_ref, *refs):
    # refs = (w0, b0, w1, b1, ..., w6, b6, out_ref)
    out_ref = refs[-1]
    param_refs = refs[:-1]
    h = x_ref[...]                                # bf16 (bt, 60)
    for li in range(NUM_LAYERS):
        w = param_refs[2 * li][...]               # bf16 (in_i, out_i)
        b = param_refs[2 * li + 1][...]           # f32  (1, out_i)
        y = jnp.dot(h, w, preferred_element_type=jnp.float32) + b
        if li != NUM_LAYERS - 1:                  # ReLU on all but the last layer
            h = jnp.maximum(y, 0.0).astype(jnp.bfloat16)
        else:
            h = y                                 # f32 (bt, 128), lanes >=2 are 0
    out_ref[...] = h.astype(out_ref.dtype)


def state_tracker_trajectory(x, weights, biases, *, batch_tile=256):
    """x: (B, 60).  weights[i]: (in_i, out_i) f32.  biases[i]: (1, out_i) f32."""
    B, in_dim = x.shape
    assert in_dim == LAYER_DIMS[0]
    orig_dtype = x.dtype

    # ---- choose batch tile: big enough to fill MXU rows, but >=2 grid steps
    # when B allows so both v7x TensorCores get work (parallel axis).
    bt = min(batch_tile, _round_up(B, 16))
    if B < 2 * bt and B >= 32:
        bt = min(bt, _round_up((B + 1) // 2, 16))
    bt = max(bt, 16)
    B_pad = _round_up(B, bt)
    grid = (B_pad // bt,)

    if B_pad != B:
        x = jnp.pad(x, ((0, B_pad - B), (0, 0)))  # zero-pad ragged batch

    # bf16 activations/weights for the MXU; f32 biases and accumulation.
    x = x.astype(jnp.bfloat16)
    w_list = [w.astype(jnp.bfloat16) for w in weights]
    b_list = [b.astype(jnp.float32) for b in biases]

    # Lane-dense output: pad the last layer's weight/bias out-dim 2 -> 128 with
    # zeros so the kernel's final store is a full-lane (unmasked) store.
    pad = OUT_PAD - LAYER_DIMS[-1]
    w_list[-1] = jnp.pad(w_list[-1], ((0, 0), (0, pad)))
    b_list[-1] = jnp.pad(b_list[-1], ((0, 0), (0, pad)))
    out_dims = LAYER_DIMS[1:-1] + [OUT_PAD]

    in_specs = [pl.BlockSpec((bt, in_dim), lambda i: (i, 0))]
    for li in range(NUM_LAYERS):
        di, do = LAYER_DIMS[li], out_dims[li]
        # Weight/bias index_maps are constant -> Pallas DMAs them only once.
        # (pl.Buffered(1) would drop their 2nd VMEM buffer, but the ~1 MiB saved
        #  is negligible here, so we keep the default for robustness.)
        in_specs.append(pl.BlockSpec((di, do), lambda i: (0, 0)))  # full weight
        in_specs.append(pl.BlockSpec((1, do), lambda i: (0, 0)))   # full bias

    out_spec = pl.BlockSpec((bt, OUT_PAD), lambda i: (i, 0))

    # Advisory cost estimate for XLA's scheduler.
    flops = 2 * B_pad * sum(a * b for a, b in zip(LAYER_DIMS[:-1], LAYER_DIMS[1:]))
    bytes_accessed = (
        B_pad * in_dim * 2
        + sum(int(np.prod(w.shape)) * 2 for w in w_list)
        + sum(int(np.prod(b.shape)) * 4 for b in b_list)
        + B_pad * OUT_PAD * 4
    )
    cost = pl.CostEstimate(flops=flops, transcendentals=0,
                           bytes_accessed=bytes_accessed)

    # Raise scoped-VMEM limit only when a very large batch tile needs it
    # (v5e default 16 MiB, v6e/v7x 32 MiB).
    est_vmem = (
        2 * bt * 128 * 2                     # double-buffered bf16 input tile
        + 2 * bt * OUT_PAD * 4               # double-buffered f32 output tile
        + 2 * sum(_round_up(a, 16) * _round_up(b, 128) * 2
                  for a, b in zip(LAYER_DIMS[:-1], out_dims))   # weights
        + 2 * sum(16 * _round_up(b, 128) * 4 for b in out_dims)  # biases
        + 3 * bt * 512 * 4                   # intermediate activation headroom
    )
    vmem_limit = None if est_vmem < (16 << 20) else min(int(est_vmem * 3 // 2),
                                                        112 << 20)

    args = [x]
    for li in range(NUM_LAYERS):
        args.append(w_list[li])
        args.append(b_list[li])

    out = pl.pallas_call(
        mlp_kernel,
        out_shape=jax.ShapeDtypeStruct((B_pad, OUT_PAD), orig_dtype),
        grid_spec=pltpu.PrefetchScalarGridSpec(
            num_scalar_prefetch=0,
            grid=grid,
            in_specs=in_specs,
            out_specs=out_spec,
        ),
        compiler_params=pltpu.CompilerParams(
            dimension_semantics=("parallel",),
            vmem_limit_bytes=vmem_limit,
        ),
        cost_estimate=cost,
    )(*args)

    return out[:B, :LAYER_DIMS[-1]]


def init_params(key):
    """Deterministic init mimicking nn.Linear default (uniform +/- 1/sqrt(fan_in))."""
    weights, biases = [], []
    for li in range(NUM_LAYERS):
        fan_in, fan_out = LAYER_DIMS[li], LAYER_DIMS[li + 1]
        key, kw, kb = jax.random.split(key, 3)
        bound = 1.0 / np.sqrt(fan_in)
        # PyTorch stores W as (out, in); build it that way then transpose to (in, out).
        w_pt = jax.random.uniform(kw, (fan_out, fan_in), jnp.float32, -bound, bound)
        b = jax.random.uniform(kb, (fan_out,), jnp.float32, -bound, bound)
        weights.append(jnp.transpose(w_pt))        # (in, out)
        biases.append(b.reshape(1, fan_out))       # (1, out)
    return weights, biases


def reference_forward(x, weights, biases):
    """Pure-JAX reference with the same bf16-input / f32-accumulate numerics."""
    h = x.astype(jnp.bfloat16)
    for li in range(NUM_LAYERS):
        y = jnp.dot(h, weights[li].astype(jnp.bfloat16),
                    preferred_element_type=jnp.float32) + biases[li]
        if li != NUM_LAYERS - 1:
            h = jnp.maximum(y, 0.0).astype(jnp.bfloat16)
        else:
            h = y
    return h.astype(x.dtype)


if __name__ == "__main__":
    key = jax.random.PRNGKey(0)
    key, kx = jax.random.split(key)

    B = 64                                   # small batch; tile auto-shrinks to 32 -> 2 grid steps
    x = jax.random.normal(kx, (B, LAYER_DIMS[0]), jnp.float32)

    weights, biases = init_params(key)

    out = state_tracker_trajectory(x, weights, biases)
    out = jax.block_until_ready(out)
    assert out.shape == (B, LAYER_DIMS[-1])

    ref = reference_forward(x, weights, biases)
    np.testing.assert_allclose(np.asarray(out), np.asarray(ref), rtol=2e-2, atol=2e-2)

    print("KERNEL_OK")
</pallas_src>

<mosaic_0001>
module attributes {stable_mosaic.version = 11 : i64} {
  func.func @mlp_kernel(%arg0: i32, %arg1: memref<32x60xbf16, #tpu.memory_space<vmem>>, %arg2: memref<60x120xbf16, #tpu.memory_space<vmem>>, %arg3: memref<1x120xf32, #tpu.memory_space<vmem>>, %arg4: memref<120x240xbf16, #tpu.memory_space<vmem>>, %arg5: memref<1x240xf32, #tpu.memory_space<vmem>>, %arg6: memref<240x480xbf16, #tpu.memory_space<vmem>>, %arg7: memref<1x480xf32, #tpu.memory_space<vmem>>, %arg8: memref<480x100xbf16, #tpu.memory_space<vmem>>, %arg9: memref<1x100xf32, #tpu.memory_space<vmem>>, %arg10: memref<100x50xbf16, #tpu.memory_space<vmem>>, %arg11: memref<1x50xf32, #tpu.memory_space<vmem>>, %arg12: memref<50x20xbf16, #tpu.memory_space<vmem>>, %arg13: memref<1x20xf32, #tpu.memory_space<vmem>>, %arg14: memref<20x128xbf16, #tpu.memory_space<vmem>>, %arg15: memref<1x128xf32, #tpu.memory_space<vmem>>, %arg16: memref<32x128xf32, #tpu.memory_space<vmem>>) attributes {dimension_semantics = [#tpu.dimension_semantics<parallel>], iteration_bounds = array<i64: 2>, scalar_prefetch = 0 : i64, scratch_operands = 0 : i64, tpu.core_type = #tpu.core_type<tc>, window_params = [{transform_indices = @transform_0, window_bounds = array<i64: 32, 60>}, {pipeline_mode = #tpu.pipeline_mode<synchronous>, transform_indices = @transform_1, window_bounds = array<i64: 60, 120>}, {pipeline_mode = #tpu.pipeline_mode<synchronous>, transform_indices = @transform_2, window_bounds = array<i64: 1, 120>}, {pipeline_mode = #tpu.pipeline_mode<synchronous>, transform_indices = @transform_3, window_bounds = array<i64: 120, 240>}, {pipeline_mode = #tpu.pipeline_mode<synchronous>, transform_indices = @transform_4, window_bounds = array<i64: 1, 240>}, {pipeline_mode = #tpu.pipeline_mode<synchronous>, transform_indices = @transform_5, window_bounds = array<i64: 240, 480>}, {pipeline_mode = #tpu.pipeline_mode<synchronous>, transform_indices = @transform_6, window_bounds = array<i64: 1, 480>}, {pipeline_mode = #tpu.pipeline_mode<synchronous>, transform_indices = @transform_7, window_bounds = array<i64: 480, 100>}, {pipeline_mode = #tpu.pipeline_mode<synchronous>, transform_indices = @transform_8, window_bounds = array<i64: 1, 100>}, {pipeline_mode = #tpu.pipeline_mode<synchronous>, transform_indices = @transform_9, window_bounds = array<i64: 100, 50>}, {pipeline_mode = #tpu.pipeline_mode<synchronous>, transform_indices = @transform_10, window_bounds = array<i64: 1, 50>}, {pipeline_mode = #tpu.pipeline_mode<synchronous>, transform_indices = @transform_11, window_bounds = array<i64: 50, 20>}, {pipeline_mode = #tpu.pipeline_mode<synchronous>, transform_indices = @transform_12, window_bounds = array<i64: 1, 20>}, {pipeline_mode = #tpu.pipeline_mode<synchronous>, transform_indices = @transform_13, window_bounds = array<i64: 20, 128>}, {pipeline_mode = #tpu.pipeline_mode<synchronous>, transform_indices = @transform_14, window_bounds = array<i64: 1, 128>}, {transform_indices = @transform_15, window_bounds = array<i64: 32, 128>}]} {
    %c0 = arith.constant 0 : index
    %c0_0 = arith.constant 0 : index
    %0 = vector.load %arg1[%c0, %c0_0] : memref<32x60xbf16, #tpu.memory_space<vmem>>, vector<32x60xbf16>
    %c0_1 = arith.constant 0 : index
    %c0_2 = arith.constant 0 : index
    %1 = vector.load %arg2[%c0_1, %c0_2] : memref<60x120xbf16, #tpu.memory_space<vmem>>, vector<60x120xbf16>
    %c0_3 = arith.constant 0 : index
    %c0_4 = arith.constant 0 : index
    %2 = vector.load %arg3[%c0_3, %c0_4] : memref<1x120xf32, #tpu.memory_space<vmem>>, vector<1x120xf32>
    %cst = arith.constant dense<0.000000e+00> : vector<32x120xf32>
    %3 = tpu.matmul %0, %1, %cst {dimension_numbers = #tpu.dot_dimension_numbers<[1], [0], [0], [1], [0, 0, 1, 1], [], []>} : vector<32x60xbf16>, vector<60x120xbf16>, vector<32x120xf32> -> vector<32x120xf32>
    %4 = vector.broadcast %2 : vector<1x120xf32> to vector<32x120xf32>
    %5 = arith.addf %3, %4 : vector<32x120xf32>
    %cst_5 = arith.constant 0.000000e+00 : f32
    %6 = vector.broadcast %cst_5 : f32 to vector<32x120xf32>
    %7 = arith.maximumf %5, %6 : vector<32x120xf32>
    %8 = arith.truncf %7 : vector<32x120xf32> to vector<32x120xbf16>
    %c0_6 = arith.constant 0 : index
    %c0_7 = arith.constant 0 : index
    %9 = vector.load %arg4[%c0_6, %c0_7] : memref<120x240xbf16, #tpu.memory_space<vmem>>, vector<120x240xbf16>
    %c0_8 = arith.constant 0 : index
    %c0_9 = arith.constant 0 : index
    %10 = vector.load %arg5[%c0_8, %c0_9] : memref<1x240xf32, #tpu.memory_space<vmem>>, vector<1x240xf32>
    %cst_10 = arith.constant dense<0.000000e+00> : vector<32x240xf32>
    %11 = tpu.matmul %8, %9, %cst_10 {dimension_numbers = #tpu.dot_dimension_numbers<[1], [0], [0], [1], [0, 0, 1, 1], [], []>} : vector<32x120xbf16>, vector<120x240xbf16>, vector<32x240xf32> -> vector<32x240xf32>
    %12 = vector.broadcast %10 : vector<1x240xf32> to vector<32x240xf32>
    %13 = arith.addf %11, %12 : vector<32x240xf32>
    %cst_11 = arith.constant 0.000000e+00 : f32
    %14 = vector.broadcast %cst_11 : f32 to vector<32x240xf32>
    %15 = arith.maximumf %13, %14 : vector<32x240xf32>
    %16 = arith.truncf %15 : vector<32x240xf32> to vector<32x240xbf16>
    %c0_12 = arith.constant 0 : index
    %c0_13 = arith.constant 0 : index
    %17 = vector.load %arg6[%c0_12, %c0_13] : memref<240x480xbf16, #tpu.memory_space<vmem>>, vector<240x480xbf16>
    %c0_14 = arith.constant 0 : index
    %c0_15 = arith.constant 0 : index
    %18 = vector.load %arg7[%c0_14, %c0_15] : memref<1x480xf32, #tpu.memory_space<vmem>>, vector<1x480xf32>
    %cst_16 = arith.constant dense<0.000000e+00> : vector<32x480xf32>
    %19 = tpu.matmul %16, %17, %cst_16 {dimension_numbers = #tpu.dot_dimension_numbers<[1], [0], [0], [1], [0, 0, 1, 1], [], []>} : vector<32x240xbf16>, vector<240x480xbf16>, vector<32x480xf32> -> vector<32x480xf32>
    %20 = vector.broadcast %18 : vector<1x480xf32> to vector<32x480xf32>
    %21 = arith.addf %19, %20 : vector<32x480xf32>
    %cst_17 = arith.constant 0.000000e+00 : f32
    %22 = vector.broadcast %cst_17 : f32 to vector<32x480xf32>
    %23 = arith.maximumf %21, %22 : vector<32x480xf32>
    %24 = arith.truncf %23 : vector<32x480xf32> to vector<32x480xbf16>
    %c0_18 = arith.constant 0 : index
    %c0_19 = arith.constant 0 : index
    %25 = vector.load %arg8[%c0_18, %c0_19] : memref<480x100xbf16, #tpu.memory_space<vmem>>, vector<480x100xbf16>
    %c0_20 = arith.constant 0 : index
    %c0_21 = arith.constant 0 : index
    %26 = vector.load %arg9[%c0_20, %c0_21] : memref<1x100xf32, #tpu.memory_space<vmem>>, vector<1x100xf32>
    %cst_22 = arith.constant dense<0.000000e+00> : vector<32x100xf32>
    %27 = tpu.matmul %24, %25, %cst_22 {dimension_numbers = #tpu.dot_dimension_numbers<[1], [0], [0], [1], [0, 0, 1, 1], [], []>} : vector<32x480xbf16>, vector<480x100xbf16>, vector<32x100xf32> -> vector<32x100xf32>
    %28 = vector.broadcast %26 : vector<1x100xf32> to vector<32x100xf32>
    %29 = arith.addf %27, %28 : vector<32x100xf32>
    %cst_23 = arith.constant 0.000000e+00 : f32
    %30 = vector.broadcast %cst_23 : f32 to vector<32x100xf32>
    %31 = arith.maximumf %29, %30 : vector<32x100xf32>
    %32 = arith.truncf %31 : vector<32x100xf32> to vector<32x100xbf16>
    %c0_24 = arith.constant 0 : index
    %c0_25 = arith.constant 0 : index
    %33 = vector.load %arg10[%c0_24, %c0_25] : memref<100x50xbf16, #tpu.memory_space<vmem>>, vector<100x50xbf16>
    %c0_26 = arith.constant 0 : index
    %c0_27 = arith.constant 0 : index
    %34 = vector.load %arg11[%c0_26, %c0_27] : memref<1x50xf32, #tpu.memory_space<vmem>>, vector<1x50xf32>
    %cst_28 = arith.constant dense<0.000000e+00> : vector<32x50xf32>
    %35 = tpu.matmul %32, %33, %cst_28 {dimension_numbers = #tpu.dot_dimension_numbers<[1], [0], [0], [1], [0, 0, 1, 1], [], []>} : vector<32x100xbf16>, vector<100x50xbf16>, vector<32x50xf32> -> vector<32x50xf32>
    %36 = vector.broadcast %34 : vector<1x50xf32> to vector<32x50xf32>
    %37 = arith.addf %35, %36 : vector<32x50xf32>
    %cst_29 = arith.constant 0.000000e+00 : f32
    %38 = vector.broadcast %cst_29 : f32 to vector<32x50xf32>
    %39 = arith.maximumf %37, %38 : vector<32x50xf32>
    %40 = arith.truncf %39 : vector<32x50xf32> to vector<32x50xbf16>
    %c0_30 = arith.constant 0 : index
    %c0_31 = arith.constant 0 : index
    %41 = vector.load %arg12[%c0_30, %c0_31] : memref<50x20xbf16, #tpu.memory_space<vmem>>, vector<50x20xbf16>
    %c0_32 = arith.constant 0 : index
    %c0_33 = arith.constant 0 : index
    %42 = vector.load %arg13[%c0_32, %c0_33] : memref<1x20xf32, #tpu.memory_space<vmem>>, vector<1x20xf32>
    %cst_34 = arith.constant dense<0.000000e+00> : vector<32x20xf32>
    %43 = tpu.matmul %40, %41, %cst_34 {dimension_numbers = #tpu.dot_dimension_numbers<[1], [0], [0], [1], [0, 0, 1, 1], [], []>} : vector<32x50xbf16>, vector<50x20xbf16>, vector<32x20xf32> -> vector<32x20xf32>
    %44 = vector.broadcast %42 : vector<1x20xf32> to vector<32x20xf32>
    %45 = arith.addf %43, %44 : vector<32x20xf32>
    %cst_35 = arith.constant 0.000000e+00 : f32
    %46 = vector.broadcast %cst_35 : f32 to vector<32x20xf32>
    %47 = arith.maximumf %45, %46 : vector<32x20xf32>
    %48 = arith.truncf %47 : vector<32x20xf32> to vector<32x20xbf16>
    %c0_36 = arith.constant 0 : index
    %c0_37 = arith.constant 0 : index
    %49 = vector.load %arg14[%c0_36, %c0_37] : memref<20x128xbf16, #tpu.memory_space<vmem>>, vector<20x128xbf16>
    %c0_38 = arith.constant 0 : index
    %c0_39 = arith.constant 0 : index
    %50 = vector.load %arg15[%c0_38, %c0_39] : memref<1x128xf32, #tpu.memory_space<vmem>>, vector<1x128xf32>
    %cst_40 = arith.constant dense<0.000000e+00> : vector<32x128xf32>
    %51 = tpu.matmul %48, %49, %cst_40 {dimension_numbers = #tpu.dot_dimension_numbers<[1], [0], [0], [1], [0, 0, 1, 1], [], []>} : vector<32x20xbf16>, vector<20x128xbf16>, vector<32x128xf32> -> vector<32x128xf32>
    %52 = vector.broadcast %50 : vector<1x128xf32> to vector<32x128xf32>
    %53 = arith.addf %51, %52 : vector<32x128xf32>
    %c0_41 = arith.constant 0 : index
    %c0_42 = arith.constant 0 : index
    %54 = vector.load %arg16[%c0_41, %c0_42] : memref<32x128xf32, #tpu.memory_space<vmem>>, vector<32x128xf32>
    tpu.vector_store %arg16[%c0_41, %c0_42], %53 {strides = array<i32>} : memref<32x128xf32, #tpu.memory_space<vmem>>, vector<32x128xf32>,
    return
  }
  func.func @transform_0(%arg0: i32) -> (i32, i32) {
    %c0_i32 = arith.constant 0 : i32
    %c0_i32_0 = arith.constant 0 : i32
    return %arg0, %c0_i32 : i32, i32
  }
  func.func @transform_1(%arg0: i32) -> (i32, i32) {
    %c0_i32 = arith.constant 0 : i32
    %c0_i32_0 = arith.constant 0 : i32
    %c0_i32_1 = arith.constant 0 : i32
    return %c0_i32, %c0_i32_0 : i32, i32
  }
  func.func @transform_2(%arg0: i32) -> (i32, i32) {
    %c0_i32 = arith.constant 0 : i32
    %c0_i32_0 = arith.constant 0 : i32
    %c0_i32_1 = arith.constant 0 : i32
    return %c0_i32, %c0_i32_0 : i32, i32
  }
  func.func @transform_3(%arg0: i32) -> (i32, i32) {
    %c0_i32 = arith.constant 0 : i32
    %c0_i32_0 = arith.constant 0 : i32
    %c0_i32_1 = arith.constant 0 : i32
    return %c0_i32, %c0_i32_0 : i32, i32
  }
  func.func @transform_4(%arg0: i32) -> (i32, i32) {
    %c0_i32 = arith.constant 0 : i32
    %c0_i32_0 = arith.constant 0 : i32
    %c0_i32_1 = arith.constant 0 : i32
    return %c0_i32, %c0_i32_0 : i32, i32
  }
  func.func @transform_5(%arg0: i32) -> (i32, i32) {
    %c0_i32 = arith.constant 0 : i32
    %c0_i32_0 = arith.constant 0 : i32
    %c0_i32_1 = arith.constant 0 : i32
    return %c0_i32, %c0_i32_0 : i32, i32
  }
  func.func @transform_6(%arg0: i32) -> (i32, i32) {
    %c0_i32 = arith.constant 0 : i32
    %c0_i32_0 = arith.constant 0 : i32
    %c0_i32_1 = arith.constant 0 : i32
    return %c0_i32, %c0_i32_0 : i32, i32
  }
  func.func @transform_7(%arg0: i32) -> (i32, i32) {
    %c0_i32 = arith.constant 0 : i32
    %c0_i32_0 = arith.constant 0 : i32
    %c0_i32_1 = arith.constant 0 : i32
    return %c0_i32, %c0_i32_0 : i32, i32
  }
  func.func @transform_8(%arg0: i32) -> (i32, i32) {
    %c0_i32 = arith.constant 0 : i32
    %c0_i32_0 = arith.constant 0 : i32
    %c0_i32_1 = arith.constant 0 : i32
    return %c0_i32, %c0_i32_0 : i32, i32
  }
  func.func @transform_9(%arg0: i32) -> (i32, i32) {
    %c0_i32 = arith.constant 0 : i32
    %c0_i32_0 = arith.constant 0 : i32
    %c0_i32_1 = arith.constant 0 : i32
    return %c0_i32, %c0_i32_0 : i32, i32
  }
  func.func @transform_10(%arg0: i32) -> (i32, i32) {
    %c0_i32 = arith.constant 0 : i32
    %c0_i32_0 = arith.constant 0 : i32
    %c0_i32_1 = arith.constant 0 : i32
    return %c0_i32, %c0_i32_0 : i32, i32
  }
  func.func @transform_11(%arg0: i32) -> (i32, i32) {
    %c0_i32 = arith.constant 0 : i32
    %c0_i32_0 = arith.constant 0 : i32
    %c0_i32_1 = arith.constant 0 : i32
    return %c0_i32, %c0_i32_0 : i32, i32
  }
  func.func @transform_12(%arg0: i32) -> (i32, i32) {
    %c0_i32 = arith.constant 0 : i32
    %c0_i32_0 = arith.constant 0 : i32
    %c0_i32_1 = arith.constant 0 : i32
    return %c0_i32, %c0_i32_0 : i32, i32
  }
  func.func @transform_13(%arg0: i32) -> (i32, i32) {
    %c0_i32 = arith.constant 0 : i32
    %c0_i32_0 = arith.constant 0 : i32
    %c0_i32_1 = arith.constant 0 : i32
    return %c0_i32, %c0_i32_0 : i32, i32
  }
  func.func @transform_14(%arg0: i32) -> (i32, i32) {
    %c0_i32 = arith.constant 0 : i32
    %c0_i32_0 = arith.constant 0 : i32
    %c0_i32_1 = arith.constant 0 : i32
    return %c0_i32, %c0_i32_0 : i32, i32
  }
  func.func @transform_15(%arg0: i32) -> (i32, i32) {
    %c0_i32 = arith.constant 0 : i32
    %c0_i32_0 = arith.constant 0 : i32
    return %arg0, %c0_i32 : i32, i32
  }
}

</mosaic_0001>

<llo_original>
// kernel: tpu_custom_call.1
$region0: #{tpu_custom_call.1}
  #allocation0 [shape = 'u32[]', space=smem, size = 0x4, offset = 0x4, fixed_abs, tag = 'smem constant byte address 0x4 - core index']
  #allocation1 [shape = 'u32[72,128]{1,0:T(1,128)}', space=vmem, size = 0x9000, scoped, tag = 'internal scratch']
  %s0 = inlined_call_operand.vmem [shape: bf16[64,60], index: 0, kind: input, shape index: {}]
  %s1 = inlined_call_operand.vmem [shape: bf16[60,120], index: 1, kind: input, shape index: {}]
  %s2 = inlined_call_operand.hbm [shape: f32[1,120], index: 2, kind: input, shape index: {}]
  %s3 = inlined_call_operand.hbm [shape: bf16[120,240], index: 3, kind: input, shape index: {}]
  %s4 = inlined_call_operand.hbm [shape: f32[1,240], index: 4, kind: input, shape index: {}]
  %s5 = inlined_call_operand.vmem [shape: bf16[240,480], index: 5, kind: input, shape index: {}]
  %s6 = inlined_call_operand.vmem [shape: f32[1,480], index: 6, kind: input, shape index: {}]
  %s7 = inlined_call_operand.vmem [shape: bf16[480,100], index: 7, kind: input, shape index: {}]
  %s8 = inlined_call_operand.hbm [shape: f32[1,100], index: 8, kind: input, shape index: {}]
  %s9 = inlined_call_operand.vmem [shape: bf16[100,50], index: 9, kind: input, shape index: {}]
  %s10 = inlined_call_operand.hbm [shape: f32[1,50], index: 10, kind: input, shape index: {}]
  %s11 = inlined_call_operand.vmem [shape: bf16[50,20], index: 11, kind: input, shape index: {}]
  %s12 = inlined_call_operand.hbm [shape: f32[1,20], index: 12, kind: input, shape index: {}]
  %s13 = inlined_call_operand.hbm [shape: bf16[20,128], index: 13, kind: input, shape index: {}]
  %s14 = inlined_call_operand.vmem [shape: f32[1,128], index: 14, kind: input, shape index: {}]
  %s15 = inlined_call_operand.hbm [shape: f32[64,128], index: 15, kind: output, shape index: {}]
  %s16 = sld [smem:[#allocation0]]
  $region121: #{tpu_custom_call.1} parent=0
    _
  %s18 = ssub.s32 1, %s16
  %s19 = scalar_select 0, %s18, %s16
  $region1: #{tpu_custom_call.1} parent=0
    #allocation2 [shape = 'u8[512]{0}', space=vmem, size = 0x400, scoped, tag = 'input window, operand 2, single buffered']
    #allocation3 [shape = 's32[2]{0}', space=sflag, size = 0x8, scoped, tag = 'scoped memory for tpu_custom_call.1']
    #allocation4 [shape = 's32[2]{0}', space=sflag, size = 0x8, scoped, tag = 'scoped memory for tpu_custom_call.1']
    #allocation5 [shape = 'u8[61440]{0}', space=vmem, size = 0xf000, scoped, tag = 'input window, operand 3, single buffered']
    #allocation6 [shape = 's32[1]{0}', space=sflag, size = 0x4, scoped, tag = 'scoped memory for tpu_custom_call.1']
    #allocation7 [shape = 'u8[1024]{0}', space=vmem, size = 0x400, scoped, tag = 'input window, operand 4, single buffered']
    #allocation8 [shape = 'u8[512]{0}', space=vmem, size = 0x400, scoped, tag = 'input window, operand 8, single buffered']
    #allocation9 [shape = 's32[1]{0}', space=sflag, size = 0x4, scoped, tag = 'scoped memory for tpu_custom_call.1']
    #allocation10 [shape = 'u8[512]{0}', space=vmem, size = 0x400, scoped, tag = 'input window, operand 10, single buffered']
    #allocation11 [shape = 'u8[512]{0}', space=vmem, size = 0x400, scoped, tag = 'input window, operand 12, single buffered']
    #allocation12 [shape = 's32[1]{0}', space=sflag, size = 0x4, scoped, tag = 'scoped memory for tpu_custom_call.1']
    #allocation13 [shape = 'u8[6144]{0}', space=vmem, size = 0x1800, scoped, tag = 'input window, operand 13, single buffered']
    #allocation14 [shape = 'u8[32768]{0}', space=vmem, size = 0x8000, scoped, tag = 'output window, operand 0']
    %20 = vsyncpa [#allocation3], 0
    %21 = vsyncpa [#allocation6], 0
    %22 = vsyncpa [#allocation9], 0
    %23 = vsyncpa [#allocation12], 0
    %24 = vsyncpa [#allocation4], 0
    %s25 = scalar_lea.sflag [#allocation4], 1
    %26 = vsyncpa %s25, 0
    loop: start=0, step=1, limit=4
    $region2: #{tpu_custom_call.1} parent=1 // loop_pre_header
      _
    $region3: #{tpu_custom_call.1} parent=1 // loop_header
      %s28 = sphi 0, %s32
      %p29 = scmp.ge.s32.totalorder %s28, 4
      %s38 = sphi 0, %s40
      %s41 = sphi 0, %s38
      %s42 = sphi 0, %s41
      %s58 = sphi 0, %s42
      %s62 = sphi 0, %s62
      %s64 = sphi 0, %s62
      %s65 = sphi 0, %s64
      %s79 = sphi 0, %s65
      %s83 = sphi 0, %s83
      %s85 = sphi 0, %s83
      %s86 = sphi 0, %s85
      %s100 = sphi 0, %s86
      %s104 = sphi 0, %s104
      %s106 = sphi 0, %s104
      %s107 = sphi 0, %s106
      %s121 = sphi 0, %s107
      %s125 = sphi 0, %s125
      %s127 = sphi 0, %s125
      %s128 = sphi 0, %s127
      %s142 = sphi 0, %s128
      %s146 = sphi 0, %s146
      %s148 = sphi 0, %s146
      %s149 = sphi 0, %s148
      %s163 = sphi 0, %s149
      %s167 = sphi 0, %s167
      %s169 = sphi 0, %s167
      %s170 = sphi 0, %s169
      %s184 = sphi 0, %s170
      %s188 = sphi 0, %s188
      %s190 = sphi 0, %s188
      %s191 = sphi 0, %s190
      %s205 = sphi 0, %s191
      %s209 = sphi 0, %s209
      %s211 = sphi 0, %s209
      %s212 = sphi 0, %s211
      %s226 = sphi 0, %s212
      %s230 = sphi 0, %s230
      %s232 = sphi 0, %s230
      %s233 = sphi 0, %s232
      %s247 = sphi 0, %s233
      %s251 = sphi 0, %s251
      %s253 = sphi 0, %s251
      %s254 = sphi 0, %s253
      %s268 = sphi 0, %s254
      %s272 = sphi 0, %s272
      %s274 = sphi 0, %s272
      %s275 = sphi 0, %s274
      %s289 = sphi 0, %s275
      %s293 = sphi 0, %s293
      %s295 = sphi 0, %s293
      %s296 = sphi 0, %s295
      %s310 = sphi 0, %s296
      %s314 = sphi 0, %s314
      %s316 = sphi 0, %s314
      %s317 = sphi 0, %s316
      %s331 = sphi 0, %s317
      %s335 = sphi 0, %s335
      %s337 = sphi 0, %s335
      %s338 = sphi 0, %s337
      %s352 = sphi 0, %s338
      %s358 = sphi 0, %s360
      %s361 = sphi 0, %s358
      %s362 = sphi 0, %s361
      %s378 = sphi 0, %s362
    $region4: #{tpu_custom_call.1} parent=1 // loop_header_branch
      %31 = sbr.rel (%p29) target = $region8
    $region5: #{tpu_custom_call.1} parent=1 // loop_body
      %s33 = ssub.s32 %s28, 1
      %s34 = ssub.s32 %s28, 2
      %s35 = sadd.s32 %s28, 1
      %s36 = ssub.s32 %s28, %s35
      %p37 = scmp.eq.s32.totalorder %s36, 0
      %s39 = sadd.s32 %s38, 1
      %s40 = scalar_select %p37, %s38, %s39
      %p43 = pneg %p37
      %p44 = scmp.eq.s32.totalorder %s28, 1
      %p45 = por %p43, %p44
      %p46 = scmp.ne.s32.totalorder %s38, %s41
      %p47 = scmp.eq.s32.totalorder %s28, 0
      %p48 = por %p46, %p47
      %p49 = scmp.ne.s32.totalorder %s38, %s41
      %p50 = scmp.eq.s32.totalorder %s33, 1
      %p51 = por %p49, %p50
      %p52 = scmp.ne.s32.totalorder %s41, %s42
      %p53 = scmp.eq.s32.totalorder %s33, 0
      %p54 = por %p52, %p53
      %p55 = scmp.ne.s32.totalorder %s41, %s42
      %p56 = scmp.eq.s32.totalorder %s34, 1
      %p57 = por %p55, %p56
      %p59 = scmp.ne.s32.totalorder %s42, %s58
      %p60 = scmp.eq.s32.totalorder %s34, 0
      %p61 = por %p59, %p60
      %s63 = sadd.s32 %s62, 1
      %p66 = scmp.eq.s32.totalorder %s28, 1
      %p67 = scmp.ne.s32.totalorder %s62, %s64
      %p68 = scmp.eq.s32.totalorder %s28, 0
      %p69 = por %p67, %p68
      %p70 = scmp.ne.s32.totalorder %s62, %s64
      %p71 = scmp.eq.s32.totalorder %s33, 1
      %p72 = por %p70, %p71
      %p73 = scmp.ne.s32.totalorder %s64, %s65
      %p74 = scmp.eq.s32.totalorder %s33, 0
      %p75 = por %p73, %p74
      %p76 = scmp.ne.s32.totalorder %s64, %s65
      %p77 = scmp.eq.s32.totalorder %s34, 1
      %p78 = por %p76, %p77
      %p80 = scmp.ne.s32.totalorder %s65, %s79
      %p81 = scmp.eq.s32.totalorder %s34, 0
      %p82 = por %p80, %p81
      %s84 = sadd.s32 %s83, 1
      %p87 = scmp.eq.s32.totalorder %s28, 1
      %p88 = scmp.ne.s32.totalorder %s83, %s85
      %p89 = scmp.eq.s32.totalorder %s28, 0
      %p90 = por %p88, %p89
      %p91 = scmp.ne.s32.totalorder %s83, %s85
      %p92 = scmp.eq.s32.totalorder %s33, 1
      %p93 = por %p91, %p92
      %p94 = scmp.ne.s32.totalorder %s85, %s86
      %p95 = scmp.eq.s32.totalorder %s33, 0
      %p96 = por %p94, %p95
      %p97 = scmp.ne.s32.totalorder %s85, %s86
      %p98 = scmp.eq.s32.totalorder %s34, 1
      %p99 = por %p97, %p98
      %p101 = scmp.ne.s32.totalorder %s86, %s100
      %p102 = scmp.eq.s32.totalorder %s34, 0
      %p103 = por %p101, %p102
      %s105 = sadd.s32 %s104, 1
      %p108 = scmp.eq.s32.totalorder %s28, 1
      %p109 = scmp.ne.s32.totalorder %s104, %s106
      %p110 = scmp.eq.s32.totalorder %s28, 0
      %p111 = por %p109, %p110
      %p112 = scmp.ne.s32.totalorder %s104, %s106
      %p113 = scmp.eq.s32.totalorder %s33, 1
      %p114 = por %p112, %p113
      %p115 = scmp.ne.s32.totalorder %s106, %s107
      %p116 = scmp.eq.s32.totalorder %s33, 0
      %p117 = por %p115, %p116
      %p118 = scmp.ne.s32.totalorder %s106, %s107
      %p119 = scmp.eq.s32.totalorder %s34, 1
      %p120 = por %p118, %p119
      %p122 = scmp.ne.s32.totalorder %s107, %s121
      %p123 = scmp.eq.s32.totalorder %s34, 0
      %p124 = por %p122, %p123
      %s126 = sadd.s32 %s125, 1
      %p129 = scmp.eq.s32.totalorder %s28, 1
      %p130 = scmp.ne.s32.totalorder %s125, %s127
      %p131 = scmp.eq.s32.totalorder %s28, 0
      %p132 = por %p130, %p131
      %p133 = scmp.ne.s32.totalorder %s125, %s127
      %p134 = scmp.eq.s32.totalorder %s33, 1
      %p135 = por %p133, %p134
      %p136 = scmp.ne.s32.totalorder %s127, %s128
      %p137 = scmp.eq.s32.totalorder %s33, 0
      %p138 = por %p136, %p137
      %p139 = scmp.ne.s32.totalorder %s127, %s128
      %p140 = scmp.eq.s32.totalorder %s34, 1
      %p141 = por %p139, %p140
      %p143 = scmp.ne.s32.totalorder %s128, %s142
      %p144 = scmp.eq.s32.totalorder %s34, 0
      %p145 = por %p143, %p144
      %s147 = sadd.s32 %s146, 1
      %p150 = scmp.eq.s32.totalorder %s28, 1
      %p151 = scmp.ne.s32.totalorder %s146, %s148
      %p152 = scmp.eq.s32.totalorder %s28, 0
      %p153 = por %p151, %p152
      %p154 = scmp.ne.s32.totalorder %s146, %s148
      %p155 = scmp.eq.s32.totalorder %s33, 1
      %p156 = por %p154, %p155
      %p157 = scmp.ne.s32.totalorder %s148, %s149
      %p158 = scmp.eq.s32.totalorder %s33, 0
      %p159 = por %p157, %p158
      %p160 = scmp.ne.s32.totalorder %s148, %s149
      %p161 = scmp.eq.s32.totalorder %s34, 1
      %p162 = por %p160, %p161
      %p164 = scmp.ne.s32.totalorder %s149, %s163
      %p165 = scmp.eq.s32.totalorder %s34, 0
      %p166 = por %p164, %p165
      %s168 = sadd.s32 %s167, 1
      %p171 = scmp.eq.s32.totalorder %s28, 1
      %p172 = scmp.ne.s32.totalorder %s167, %s169
      %p173 = scmp.eq.s32.totalorder %s28, 0
      %p174 = por %p172, %p173
      %p175 = scmp.ne.s32.totalorder %s167, %s169
      %p176 = scmp.eq.s32.totalorder %s33, 1
      %p177 = por %p175, %p176
      %p178 = scmp.ne.s32.totalorder %s169, %s170
      %p179 = scmp.eq.s32.totalorder %s33, 0
      %p180 = por %p178, %p179
      %p181 = scmp.ne.s32.totalorder %s169, %s170
      %p182 = scmp.eq.s32.totalorder %s34, 1
      %p183 = por %p181, %p182
      %p185 = scmp.ne.s32.totalorder %s170, %s184
      %p186 = scmp.eq.s32.totalorder %s34, 0
      %p187 = por %p185, %p186
      %s189 = sadd.s32 %s188, 1
      %p192 = scmp.eq.s32.totalorder %s28, 1
      %p193 = scmp.ne.s32.totalorder %s188, %s190
      %p194 = scmp.eq.s32.totalorder %s28, 0
      %p195 = por %p193, %p194
      %p196 = scmp.ne.s32.totalorder %s188, %s190
      %p197 = scmp.eq.s32.totalorder %s33, 1
      %p198 = por %p196, %p197
      %p199 = scmp.ne.s32.totalorder %s190, %s191
      %p200 = scmp.eq.s32.totalorder %s33, 0
      %p201 = por %p199, %p200
      %p202 = scmp.ne.s32.totalorder %s190, %s191
      %p203 = scmp.eq.s32.totalorder %s34, 1
      %p204 = por %p202, %p203
      %p206 = scmp.ne.s32.totalorder %s191, %s205
      %p207 = scmp.eq.s32.totalorder %s34, 0
      %p208 = por %p206, %p207
      %s210 = sadd.s32 %s209, 1
      %p213 = scmp.eq.s32.totalorder %s28, 1
      %p214 = scmp.ne.s32.totalorder %s209, %s211
      %p215 = scmp.eq.s32.totalorder %s28, 0
      %p216 = por %p214, %p215
      %p217 = scmp.ne.s32.totalorder %s209, %s211
      %p218 = scmp.eq.s32.totalorder %s33, 1
      %p219 = por %p217, %p218
      %p220 = scmp.ne.s32.totalorder %s211, %s212
      %p221 = scmp.eq.s32.totalorder %s33, 0
      %p222 = por %p220, %p221
      %p223 = scmp.ne.s32.totalorder %s211, %s212
      %p224 = scmp.eq.s32.totalorder %s34, 1
      %p225 = por %p223, %p224
      %p227 = scmp.ne.s32.totalorder %s212, %s226
      %p228 = scmp.eq.s32.totalorder %s34, 0
      %p229 = por %p227, %p228
      %s231 = sadd.s32 %s230, 1
      %p234 = scmp.eq.s32.totalorder %s28, 1
      %p235 = scmp.ne.s32.totalorder %s230, %s232
      %p236 = scmp.eq.s32.totalorder %s28, 0
      %p237 = por %p235, %p236
      %p238 = scmp.ne.s32.totalorder %s230, %s232
      %p239 = scmp.eq.s32.totalorder %s33, 1
      %p240 = por %p238, %p239
      %p241 = scmp.ne.s32.totalorder %s232, %s233
      %p242 = scmp.eq.s32.totalorder %s33, 0
      %p243 = por %p241, %p242
      %p244 = scmp.ne.s32.totalorder %s232, %s233
      %p245 = scmp.eq.s32.totalorder %s34, 1
      %p246 = por %p244, %p245
      %p248 = scmp.ne.s32.totalorder %s233, %s247
      %p249 = scmp.eq.s32.totalorder %s34, 0
      %p250 = por %p248, %p249
      %s252 = sadd.s32 %s251, 1
      %p255 = scmp.eq.s32.totalorder %s28, 1
      %p256 = scmp.ne.s32.totalorder %s251, %s253
      %p257 = scmp.eq.s32.totalorder %s28, 0
      %p258 = por %p256, %p257
      %p259 = scmp.ne.s32.totalorder %s251, %s253
      %p260 = scmp.eq.s32.totalorder %s33, 1
      %p261 = por %p259, %p260
      %p262 = scmp.ne.s32.totalorder %s253, %s254
      %p263 = scmp.eq.s32.totalorder %s33, 0
      %p264 = por %p262, %p263
      %p265 = scmp.ne.s32.totalorder %s253, %s254
      %p266 = scmp.eq.s32.totalorder %s34, 1
      %p267 = por %p265, %p266
      %p269 = scmp.ne.s32.totalorder %s254, %s268
      %p270 = scmp.eq.s32.totalorder %s34, 0
      %p271 = por %p269, %p270
      %s273 = sadd.s32 %s272, 1
      %p276 = scmp.eq.s32.totalorder %s28, 1
      %p277 = scmp.ne.s32.totalorder %s272, %s274
      %p278 = scmp.eq.s32.totalorder %s28, 0
      %p279 = por %p277, %p278
      %p280 = scmp.ne.s32.totalorder %s272, %s274
      %p281 = scmp.eq.s32.totalorder %s33, 1
      %p282 = por %p280, %p281
      %p283 = scmp.ne.s32.totalorder %s274, %s275
      %p284 = scmp.eq.s32.totalorder %s33, 0
      %p285 = por %p283, %p284
      %p286 = scmp.ne.s32.totalorder %s274, %s275
      %p287 = scmp.eq.s32.totalorder %s34, 1
      %p288 = por %p286, %p287
      %p290 = scmp.ne.s32.totalorder %s275, %s289
      %p291 = scmp.eq.s32.totalorder %s34, 0
      %p292 = por %p290, %p291
      %s294 = sadd.s32 %s293, 1
      %p297 = scmp.eq.s32.totalorder %s28, 1
      %p298 = scmp.ne.s32.totalorder %s293, %s295
      %p299 = scmp.eq.s32.totalorder %s28, 0
      %p300 = por %p298, %p299
      %p301 = scmp.ne.s32.totalorder %s293, %s295
      %p302 = scmp.eq.s32.totalorder %s33, 1
      %p303 = por %p301, %p302
      %p304 = scmp.ne.s32.totalorder %s295, %s296
      %p305 = scmp.eq.s32.totalorder %s33, 0
      %p306 = por %p304, %p305
      %p307 = scmp.ne.s32.totalorder %s295, %s296
      %p308 = scmp.eq.s32.totalorder %s34, 1
      %p309 = por %p307, %p308
      %p311 = scmp.ne.s32.totalorder %s296, %s310
      %p312 = scmp.eq.s32.totalorder %s34, 0
      %p313 = por %p311, %p312
      %s315 = sadd.s32 %s314, 1
      %p318 = scmp.eq.s32.totalorder %s28, 1
      %p319 = scmp.ne.s32.totalorder %s314, %s316
      %p320 = scmp.eq.s32.totalorder %s28, 0
      %p321 = por %p319, %p320
      %p322 = scmp.ne.s32.totalorder %s314, %s316
      %p323 = scmp.eq.s32.totalorder %s33, 1
      %p324 = por %p322, %p323
      %p325 = scmp.ne.s32.totalorder %s316, %s317
      %p326 = scmp.eq.s32.totalorder %s33, 0
      %p327 = por %p325, %p326
      %p328 = scmp.ne.s32.totalorder %s316, %s317
      %p329 = scmp.eq.s32.totalorder %s34, 1
      %p330 = por %p328, %p329
      %p332 = scmp.ne.s32.totalorder %s317, %s331
      %p333 = scmp.eq.s32.totalorder %s34, 0
      %p334 = por %p332, %p333
      %s336 = sadd.s32 %s335, 1
      %p339 = scmp.eq.s32.totalorder %s28, 1
      %p340 = scmp.ne.s32.totalorder %s335, %s337
      %p341 = scmp.eq.s32.totalorder %s28, 0
      %p342 = por %p340, %p341
      %p343 = scmp.ne.s32.totalorder %s335, %s337
      %p344 = scmp.eq.s32.totalorder %s33, 1
      %p345 = por %p343, %p344
      %p346 = scmp.ne.s32.totalorder %s337, %s338
      %p347 = scmp.eq.s32.totalorder %s33, 0
      %p348 = por %p346, %p347
      %p349 = scmp.ne.s32.totalorder %s337, %s338
      %p350 = scmp.eq.s32.totalorder %s34, 1
      %p351 = por %p349, %p350
      %p353 = scmp.ne.s32.totalorder %s338, %s352
      %p354 = scmp.eq.s32.totalorder %s34, 0
      %p355 = por %p353, %p354
      %s356 = ssub.s32 %s28, %s35
      %p357 = scmp.eq.s32.totalorder %s356, 0
      %s359 = sadd.s32 %s358, 1
      %s360 = scalar_select %p357, %s358, %s359
      %p363 = pneg %p357
      %p364 = scmp.eq.s32.totalorder %s28, 1
      %p365 = por %p363, %p364
      %p366 = scmp.ne.s32.totalorder %s358, %s361
      %p367 = scmp.eq.s32.totalorder %s28, 0
      %p368 = por %p366, %p367
      %p369 = scmp.ne.s32.totalorder %s358, %s361
      %p370 = scmp.eq.s32.totalorder %s33, 1
      %p371 = por %p369, %p370
      %p372 = scmp.ne.s32.totalorder %s361, %s362
      %p373 = scmp.eq.s32.totalorder %s33, 0
      %p374 = por %p372, %p373
      %p375 = scmp.ne.s32.totalorder %s361, %s362
      %p376 = scmp.eq.s32.totalorder %s34, 1
      %p377 = por %p375, %p376
      %p379 = scmp.ne.s32.totalorder %s362, %s378
      %p380 = scmp.eq.s32.totalorder %s34, 0
      %p381 = por %p379, %p380
      %p382 = scmp.le.s32.totalorder 1, %s28
      %p383 = scmp.lt.s32.totalorder %s28, 3
      %p384 = pnand %p382, %p383
      %p385 = pneg %p384
      // Predicated region
      $region9: #{tpu_custom_call.1} parent=5 // pred_check
        _
      $region10: #{tpu_custom_call.1} parent=5 // pred_check_branch
        %387 = sbr.rel (%p384) target = $region12
      $region11: #{tpu_custom_call.1} parent=5 // pred_region
        %s388 = ssub.s32 %s28, 1
        // Predicated region
        $region13: #{tpu_custom_call.1} parent=11 // pred_check
          %p389 = pneg %p75
        $region14: #{tpu_custom_call.1} parent=11 // pred_check_branch
          %391 = sbr.rel (%p389) target = $region16
        $region15: #{tpu_custom_call.1} parent=11 // pred_region
          _
        $region16: #{tpu_custom_call.1} parent=11 // pred_fallthru
          _
        // Predicated region
        $region17: #{tpu_custom_call.1} parent=11 // pred_check
          %p392 = pneg %p96
        $region18: #{tpu_custom_call.1} parent=11 // pred_check_branch
          %394 = sbr.rel (%p392) target = $region20
        $region19: #{tpu_custom_call.1} parent=11 // pred_region
          %396 = vsyncadd [#allocation3], 0
          %s398 = sshll.u32 %s2, 4
          %s399 = int_to_ptr.hbm [resolvable:$true] %s398
          %s400 = sshll.u32 [#allocation2], 4
          %s401 = int_to_ptr.vmem [resolvable:$true] %s400
          %403 = dma.hbm_to_vmem [thread:$0]  %s399, 16, %s401, [#allocation3]
        $region20: #{tpu_custom_call.1} parent=11 // pred_fallthru
          _
        // Predicated region
        $region21: #{tpu_custom_call.1} parent=11 // pred_check
          %p404 = pneg %p117
        $region22: #{tpu_custom_call.1} parent=11 // pred_check_branch
          %406 = sbr.rel (%p404) target = $region24
        $region23: #{tpu_custom_call.1} parent=11 // pred_region
          %408 = vsyncadd [#allocation6], 0
          %s409 = sshll.u32 %s3, 4
          %s410 = int_to_ptr.hbm [resolvable:$true] %s409
          %s411 = sshll.u32 [#allocation5], 4
          %s412 = int_to_ptr.vmem [resolvable:$true] %s411
          %417 = dma.hbm_to_vmem [thread:$0]  %s410, 1920, %s412, [#allocation6], 128, 128, 8
        $region24: #{tpu_custom_call.1} parent=11 // pred_fallthru
          _
        // Predicated region
        $region25: #{tpu_custom_call.1} parent=11 // pred_check
          %p418 = pneg %p138
        $region26: #{tpu_custom_call.1} parent=11 // pred_check_branch
          %420 = sbr.rel (%p418) target = $region28
        $region27: #{tpu_custom_call.1} parent=11 // pred_region
          %422 = vsyncadd [#allocation6], 0
          %s424 = sshll.u32 %s4, 4
          %s425 = int_to_ptr.hbm [resolvable:$true] %s424
          %s426 = sshll.u32 [#allocation7], 4
          %s427 = int_to_ptr.vmem [resolvable:$true] %s426
          %429 = dma.hbm_to_vmem [thread:$0]  %s425, 32, %s427, [#allocation6]
        $region28: #{tpu_custom_call.1} parent=11 // pred_fallthru
          _
        // Predicated region
        $region29: #{tpu_custom_call.1} parent=11 // pred_check
          %p430 = pneg %p159
        $region30: #{tpu_custom_call.1} parent=11 // pred_check_branch
          %432 = sbr.rel (%p430) target = $region32
        $region31: #{tpu_custom_call.1} parent=11 // pred_region
          _
        $region32: #{tpu_custom_call.1} parent=11 // pred_fallthru
          _
        // Predicated region
        $region33: #{tpu_custom_call.1} parent=11 // pred_check
          %p433 = pneg %p180
        $region34: #{tpu_custom_call.1} parent=11 // pred_check_branch
          %435 = sbr.rel (%p433) target = $region36
        $region35: #{tpu_custom_call.1} parent=11 // pred_region
          _
        $region36: #{tpu_custom_call.1} parent=11 // pred_fallthru
          _
        // Predicated region
        $region37: #{tpu_custom_call.1} parent=11 // pred_check
          %p436 = pneg %p201
        $region38: #{tpu_custom_call.1} parent=11 // pred_check_branch
          %438 = sbr.rel (%p436) target = $region40
        $region39: #{tpu_custom_call.1} parent=11 // pred_region
          _
        $region40: #{tpu_custom_call.1} parent=11 // pred_fallthru
          _
        // Predicated region
        $region41: #{tpu_custom_call.1} parent=11 // pred_check
          %p439 = pneg %p222
        $region42: #{tpu_custom_call.1} parent=11 // pred_check_branch
          %441 = sbr.rel (%p439) target = $region44
        $region43: #{tpu_custom_call.1} parent=11 // pred_region
          %443 = vsyncadd [#allocation9], 0
          %s445 = sshll.u32 %s8, 4
          %s446 = int_to_ptr.hbm [resolvable:$true] %s445
          %s447 = sshll.u32 [#allocation8], 4
          %s448 = int_to_ptr.vmem [resolvable:$true] %s447
          %450 = dma.hbm_to_vmem [thread:$0]  %s446, 16, %s448, [#allocation9]
        $region44: #{tpu_custom_call.1} parent=11 // pred_fallthru
          _
        // Predicated region
        $region45: #{tpu_custom_call.1} parent=11 // pred_check
          %p451 = pneg %p243
        $region46: #{tpu_custom_call.1} parent=11 // pred_check_branch
          %453 = sbr.rel (%p451) target = $region48
        $region47: #{tpu_custom_call.1} parent=11 // pred_region
          _
        $region48: #{tpu_custom_call.1} parent=11 // pred_fallthru
          _
        // Predicated region
        $region49: #{tpu_custom_call.1} parent=11 // pred_check
          %p454 = pneg %p264
        $region50: #{tpu_custom_call.1} parent=11 // pred_check_branch
          %456 = sbr.rel (%p454) target = $region52
        $region51: #{tpu_custom_call.1} parent=11 // pred_region
          %458 = vsyncadd [#allocation9], 0
          %s460 = sshll.u32 %s10, 4
          %s461 = int_to_ptr.hbm [resolvable:$true] %s460
          %s462 = sshll.u32 [#allocation10], 4
          %s463 = int_to_ptr.vmem [resolvable:$true] %s462
          %465 = dma.hbm_to_vmem [thread:$0]  %s461, 16, %s463, [#allocation9]
        $region52: #{tpu_custom_call.1} parent=11 // pred_fallthru
          _
        // Predicated region
        $region53: #{tpu_custom_call.1} parent=11 // pred_check
          %p466 = pneg %p285
        $region54: #{tpu_custom_call.1} parent=11 // pred_check_branch
          %468 = sbr.rel (%p466) target = $region56
        $region55: #{tpu_custom_call.1} parent=11 // pred_region
          _
        $region56: #{tpu_custom_call.1} parent=11 // pred_fallthru
          _
        // Predicated region
        $region57: #{tpu_custom_call.1} parent=11 // pred_check
          %p469 = pneg %p306
        $region58: #{tpu_custom_call.1} parent=11 // pred_check_branch
          %471 = sbr.rel (%p469) target = $region60
        $region59: #{tpu_custom_call.1} parent=11 // pred_region
          %473 = vsyncadd [#allocation12], 0
          %s475 = sshll.u32 %s12, 4
          %s476 = int_to_ptr.hbm [resolvable:$true] %s475
          %s477 = sshll.u32 [#allocation11], 4
          %s478 = int_to_ptr.vmem [resolvable:$true] %s477
          %480 = dma.hbm_to_vmem [thread:$0]  %s476, 16, %s478, [#allocation12]
        $region60: #{tpu_custom_call.1} parent=11 // pred_fallthru
          _
        // Predicated region
        $region61: #{tpu_custom_call.1} parent=11 // pred_check
          %p481 = pneg %p327
        $region62: #{tpu_custom_call.1} parent=11 // pred_check_branch
          %483 = sbr.rel (%p481) target = $region64
        $region63: #{tpu_custom_call.1} parent=11 // pred_region
          %485 = vsyncadd [#allocation12], 0
          %s486 = sshll.u32 %s13, 4
          %s487 = int_to_ptr.hbm [resolvable:$true] %s486
          %s488 = sshll.u32 [#allocation13], 4
          %s489 = int_to_ptr.vmem [resolvable:$true] %s488
          %494 = dma.hbm_to_vmem [thread:$0]  %s487, 192, %s489, [#allocation12], 64, 64, 4
        $region64: #{tpu_custom_call.1} parent=11 // pred_fallthru
          _
        // Predicated region
        $region65: #{tpu_custom_call.1} parent=11 // pred_check
          %p495 = pneg %p348
        $region66: #{tpu_custom_call.1} parent=11 // pred_check_branch
          %497 = sbr.rel (%p495) target = $region68
        $region67: #{tpu_custom_call.1} parent=11 // pred_region
          _
        $region68: #{tpu_custom_call.1} parent=11 // pred_fallthru
          _
      $region12: #{tpu_custom_call.1} parent=5 // pred_fallthru
        _
      %p498 = scmp.lt.s32.totalorder %s28, 2
      // Predicated region
      $region69: #{tpu_custom_call.1} parent=5 // pred_check
        %p499 = pneg %p498
      $region70: #{tpu_custom_call.1} parent=5 // pred_check_branch
        %501 = sbr.rel (%p499) target = $region72
      $region71: #{tpu_custom_call.1} parent=5 // pred_region
        // Predicated region
        $region73: #{tpu_custom_call.1} parent=71 // pred_check
          %p502 = pneg %p48
        $region74: #{tpu_custom_call.1} parent=71 // pred_check_branch
          %504 = sbr.rel (%p502) target = $region76
        $region75: #{tpu_custom_call.1} parent=71 // pred_region
          %s505 = smul.u32 4, %s28
          %p506 = scmp.lt.s32.totalorder %s505, 7
          %s507 = scalar_select %p506, %s505, 7
          %s508 = smul.addr %s507, 4
          %s509 = scalar_lea.vmem %s0, %s508
          %s510 = smul.u32 4, %s28
        $region76: #{tpu_custom_call.1} parent=71 // pred_fallthru
          _
      $region72: #{tpu_custom_call.1} parent=5 // pred_fallthru
        _
      %p511 = scmp.le.s32.totalorder 1, %s28
      %p512 = scmp.lt.s32.totalorder %s28, 3
      %p513 = pnand %p511, %p512
      %p514 = pneg %p513
      // Predicated region
      $region77: #{tpu_custom_call.1} parent=5 // pred_check
        _
      $region78: #{tpu_custom_call.1} parent=5 // pred_check_branch
        %516 = sbr.rel (%p513) target = $region80
      $region79: #{tpu_custom_call.1} parent=5 // pred_region
        %s517 = ssub.s32 %s28, 1
        // Predicated region
        $region81: #{tpu_custom_call.1} parent=79 // pred_check
          %p518 = pneg %p96
        $region82: #{tpu_custom_call.1} parent=79 // pred_check_branch
          %520 = sbr.rel (%p518) target = $region84
        $region83: #{tpu_custom_call.1} parent=79 // pred_region
          %522 = dma.done [#allocation3], 16
        $region84: #{tpu_custom_call.1} parent=79 // pred_fallthru
          _
        // Predicated region
        $region85: #{tpu_custom_call.1} parent=79 // pred_check
          %p523 = pneg %p117
        $region86: #{tpu_custom_call.1} parent=79 // pred_check_branch
          %525 = sbr.rel (%p523) target = $region88
        $region87: #{tpu_custom_call.1} parent=79 // pred_region
          %527 = dma.done [#allocation6], 1920
        $region88: #{tpu_custom_call.1} parent=79 // pred_fallthru
          _
        // Predicated region
        $region89: #{tpu_custom_call.1} parent=79 // pred_check
          %p528 = pneg %p138
        $region90: #{tpu_custom_call.1} parent=79 // pred_check_branch
          %530 = sbr.rel (%p528) target = $region92
        $region91: #{tpu_custom_call.1} parent=79 // pred_region
          %532 = dma.done [#allocation6], 32
        $region92: #{tpu_custom_call.1} parent=79 // pred_fallthru
          _
        // Predicated region
        $region93: #{tpu_custom_call.1} parent=79 // pred_check
          %p533 = pneg %p222
        $region94: #{tpu_custom_call.1} parent=79 // pred_check_branch
          %535 = sbr.rel (%p533) target = $region96
        $region95: #{tpu_custom_call.1} parent=79 // pred_region
          %537 = dma.done [#allocation9], 16
        $region96: #{tpu_custom_call.1} parent=79 // pred_fallthru
          _
        // Predicated region
        $region97: #{tpu_custom_call.1} parent=79 // pred_check
          %p538 = pneg %p264
        $region98: #{tpu_custom_call.1} parent=79 // pred_check_branch
          %540 = sbr.rel (%p538) target = $region100
        $region99: #{tpu_custom_call.1} parent=79 // pred_region
          %542 = dma.done [#allocation9], 16
        $region100: #{tpu_custom_call.1} parent=79 // pred_fallthru
          _
        // Predicated region
        $region101: #{tpu_custom_call.1} parent=79 // pred_check
          %p543 = pneg %p306
        $region102: #{tpu_custom_call.1} parent=79 // pred_check_branch
          %545 = sbr.rel (%p543) target = $region104
        $region103: #{tpu_custom_call.1} parent=79 // pred_region
          %547 = dma.done [#allocation12], 16
        $region104: #{tpu_custom_call.1} parent=79 // pred_fallthru
          _
        // Predicated region
        $region105: #{tpu_custom_call.1} parent=79 // pred_check
          %p548 = pneg %p327
        $region106: #{tpu_custom_call.1} parent=79 // pred_check_branch
          %550 = sbr.rel (%p548) target = $region108
        $region107: #{tpu_custom_call.1} parent=79 // pred_region
          %552 = dma.done [#allocation12], 192
        $region108: #{tpu_custom_call.1} parent=79 // pred_fallthru
          _
        %s553 = smul.u32 4, %s33
        %p554 = scmp.lt.s32.totalorder %s553, 7
        %s555 = scalar_select %p554, %s553, 7
        %s556 = smul.addr %s555, 4
        %s557 = scalar_lea.vmem %s0, %s556
        %p558 = pneg %p54
        %p559 = pneg %p51
        %p560 = pneg %p75
        %p561 = pneg %p72
        %p562 = pneg %p96
        %p563 = pneg %p93
        %p564 = pneg %p117
        %p565 = pneg %p114
        %p566 = pneg %p138
        %p567 = pneg %p135
        %p568 = pneg %p159
        %p569 = pneg %p156
        %p570 = pneg %p180
        %p571 = pneg %p177
        %p572 = pneg %p201
        %p573 = pneg %p198
        %p574 = pneg %p222
        %p575 = pneg %p219
        %p576 = pneg %p243
        %p577 = pneg %p240
        %p578 = pneg %p264
        %p579 = pneg %p261
        %p580 = pneg %p285
        %p581 = pneg %p282
        %p582 = pneg %p306
        %p583 = pneg %p303
        %p584 = pneg %p327
        %p585 = pneg %p324
        %p586 = pneg %p348
        %p587 = pneg %p345
        %p588 = pneg %p374
        %p589 = pneg %p371
        %s590 = sand.u32 %s361, 1
        %s591 = scalar_lea.sflag [#allocation4], %s590
        %s592 = sand.u32 %s361, 1
        %s593 = smul.addr %s592, 32
        %s594 = scalar_lea.vmem [#allocation14], %s593
        %s595 = smul.u32 4, %s33
        %p596 = scmp.lt.s32.totalorder %s595, 7
        %s597 = scalar_select %p596, %s595, 7
        %s598 = smul.addr %s597, 4
        %s599 = scalar_lea.vmem %s0, %s598
        %s600 = smul.u32 4, %s33
        %s601 = smul.u32 4, %s33
        %v603 = vld [vmem:[%s599] sm:$0xf]
        %v604 = vld [vmem:[%s599 + $0x4] sm:$0xf]
        %v605 = vld [vmem:[%s599 + $0x8] sm:$0xf]
        %v606 = vld [vmem:[%s599 + $0xc] sm:$0xf]
        %v607 = vld [vmem:[%s1] sm:$0xf]
        %v608 = vld [vmem:[%s1 + $0x4] sm:$0xf]
        %v609 = vld [vmem:[%s1 + $0x8] sm:$0xf]
        %v610 = vld [vmem:[%s1 + $0xc] sm:$0xf]
        %v611 = vld [vmem:[%s1 + $0x10] sm:$0xf]
        %v612 = vld [vmem:[%s1 + $0x14] sm:$0xf]
        %v613 = vld [vmem:[%s1 + $0x18] sm:$0xf]
        %v614 = vld [vmem:[%s1 + $0x1c] sm:$0x3]
        %v615 = vld [vmem:[#allocation2] sm:$0x1]
        %v617 = vperm.slane %v615, 0
        %v623 = vunpack.c.l.b16 %v603
        %v624 = vunpack.c.l.b16 %v604
        %v625 = vunpack.c.l.b16 %v605
        %v626 = vunpack.c.l.b16 %v606
        %v627 = vpack.c.b16 %v624, %v623
        %v628 = vpack.c.b16 %v626, %v625
        %v637 = vunpack.c.l.b16 %v607
        %v638 = vunpack.c.l.b16 %v608
        %v639 = vunpack.c.l.b16 %v609
        %v640 = vunpack.c.l.b16 %v610
        %v641 = vunpack.c.l.b16 %v611
        %v642 = vunpack.c.l.b16 %v612
        %v643 = vunpack.c.l.b16 %v613
        %v644 = vunpack.c.l.b16 %v614
        %v645 = vpack.c.b16 %v638, %v637
        %v646 = vpack.c.b16 %v640, %v639
        %v647 = vpack.c.b16 %v642, %v641
        %v648 = vpack.c.b16 %v644, %v643
        %vm652 = vcmask 490496
        %v654 = vsel %vm652, %v627, 0
        %v657 = vsel %vm652, %v628, 0
        %vm659 = vcmask 1045504
        %v661 = vsel %vm659, %v648, 0
        %663 = vmatpush.bf16.msra.mxu0 0
        %664 = vmatpush.bf16.msra.mxu0 0
        %665 = vmatpush.bf16.msra.mxu0 0
        %666 = vmatpush.bf16.msra.mxu0 0
        %667 = vmatpush.bf16.msra.mxu0 %v661
        %668 = vmatpush.bf16.msra.mxu0 %v647
        %669 = vmatpush.bf16.msra.mxu0 %v646
        %670 = vmatpush.bf16.msra.mxu0 %v645
        %671 = vmatmul.bf16.gmra.mxu0 %v654
        %v672 = vpop.f32.mrf.mxu0
        %v673 = vadd.f32 %v617, %v672
        %v674 = vpop.f32.mrf.mxu0
        %v675 = vadd.f32 %v617, %v674
        %676 = vmatmul.bf16.gmra.mxu0 %v657
        %v677 = vpop.f32.mrf.mxu0
        %v678 = vadd.f32 %v617, %v677
        %v679 = vpop.f32.mrf.mxu0
        %v680 = vadd.f32 %v617, %v679
        %681 = vdwg.mxu0
        %v682 = vmax.f32 %v673, 0.0
        %v683 = vmax.f32 %v675, 0.0
        %v684 = vmax.f32 %v678, 0.0
        %v685 = vmax.f32 %v680, 0.0
        %v686 = vpack.c.bf16 %v683, %v682
        %v687 = vpack.c.bf16 %v685, %v684
        %v688 = vld [vmem:[#allocation5] sm:$0xff]
        %v689 = vld [vmem:[#allocation5 + $0x8] sm:$0xff]
        %v690 = vld [vmem:[#allocation5 + $0x10] sm:$0xff]
        %v691 = vld [vmem:[#allocation5 + $0x18] sm:$0xff]
        %v692 = vld [vmem:[#allocation5 + $0x20] sm:$0xff]
        %v693 = vld [vmem:[#allocation5 + $0x28] sm:$0xff]
        %v694 = vld [vmem:[#allocation5 + $0x30] sm:$0xff]
        %v695 = vld [vmem:[#allocation5 + $0x38] sm:$0xff]
        %v696 = vld [vmem:[#allocation5 + $0x40] sm:$0xff]
        %v697 = vld [vmem:[#allocation5 + $0x48] sm:$0xff]
        %v698 = vld [vmem:[#allocation5 + $0x50] sm:$0xff]
        %v699 = vld [vmem:[#allocation5 + $0x58] sm:$0xff]
        %v700 = vld [vmem:[#allocation5 + $0x60] sm:$0xff]
        %v701 = vld [vmem:[#allocation5 + $0x68] sm:$0xff]
        %v702 = vld [vmem:[#allocation5 + $0x70] sm:$0xff]
        %v703 = vld [vmem:[#allocation7] sm:$0x3]
        %v705 = vperm.slane %v703, 0
        %v706 = vperm.slane %v703, 1
        %v724 = vunpack.c.l.b16 %v688
        %v725 = vunpack.c.h.b16 %v688
        %v726 = vunpack.c.l.b16 %v689
        %v727 = vunpack.c.h.b16 %v689
        %v728 = vunpack.c.l.b16 %v690
        %v729 = vunpack.c.h.b16 %v690
        %v730 = vunpack.c.l.b16 %v691
        %v731 = vunpack.c.h.b16 %v691
        %v732 = vunpack.c.l.b16 %v692
        %v733 = vunpack.c.h.b16 %v692
        %v734 = vunpack.c.l.b16 %v693
        %v735 = vunpack.c.h.b16 %v693
        %v736 = vunpack.c.l.b16 %v694
        %v737 = vunpack.c.h.b16 %v694
        %v738 = vunpack.c.l.b16 %v695
        %v739 = vunpack.c.h.b16 %v695
        %v740 = vunpack.c.l.b16 %v696
        %v741 = vunpack.c.h.b16 %v696
        %v742 = vunpack.c.l.b16 %v697
        %v743 = vunpack.c.h.b16 %v697
        %v744 = vunpack.c.l.b16 %v698
        %v745 = vunpack.c.h.b16 %v698
        %v746 = vunpack.c.l.b16 %v699
        %v747 = vunpack.c.h.b16 %v699
        %v748 = vunpack.c.l.b16 %v700
        %v749 = vunpack.c.h.b16 %v700
        %v750 = vunpack.c.l.b16 %v701
        %v751 = vunpack.c.h.b16 %v701
        %v752 = vunpack.c.l.b16 %v702
        %v753 = vunpack.c.h.b16 %v702
        %v754 = vpack.c.b16 %v726, %v724
        %v755 = vpack.c.b16 %v727, %v725
        %v756 = vpack.c.b16 %v730, %v728
        %v757 = vpack.c.b16 %v731, %v729
        %v758 = vpack.c.b16 %v734, %v732
        %v759 = vpack.c.b16 %v735, %v733
        %v760 = vpack.c.b16 %v738, %v736
        %v761 = vpack.c.b16 %v739, %v737
        %v762 = vpack.c.b16 %v742, %v740
        %v763 = vpack.c.b16 %v743, %v741
        %v764 = vpack.c.b16 %v746, %v744
        %v765 = vpack.c.b16 %v747, %v745
        %v766 = vpack.c.b16 %v750, %v748
        %v767 = vpack.c.b16 %v751, %v749
        %v768 = vpack.c.b16 %v752, %v752
        %v769 = vpack.c.b16 %v753, %v753
        %vm784 = vcmask 982016
        %v786 = vsel %vm784, %v686, 0
        %v789 = vsel %vm784, %v687, 0
        %vm791 = vcmask 1043456
        %v793 = vsel %vm791, %v768, 0
        %v796 = vsel %vm791, %v769, 0
        %798 = vmatpush.bf16.msra.mxu0 %v793
        %799 = vmatpush.bf16.msra.mxu0 %v766
        %800 = vmatpush.bf16.msra.mxu0 %v764
        %801 = vmatpush.bf16.msra.mxu0 %v762
        %802 = vmatpush.bf16.msra.mxu0 %v760
        %803 = vmatpush.bf16.msra.mxu0 %v758
        %804 = vmatpush.bf16.msra.mxu0 %v756
        %805 = vmatpush.bf16.msra.mxu0 %v754
        %806 = vmatmul.bf16.gmra.mxu0 %v786
        %v807 = vpop.f32.mrf.mxu0
        %v808 = vadd.f32 %v705, %v807
        %v809 = vpop.f32.mrf.mxu0
        %v810 = vadd.f32 %v705, %v809
        %811 = vmatmul.bf16.gmra.mxu0 %v789
        %v812 = vpop.f32.mrf.mxu0
        %v813 = vadd.f32 %v705, %v812
        %v814 = vpop.f32.mrf.mxu0
        %v815 = vadd.f32 %v705, %v814
        %816 = vdwg.mxu0
        %817 = vmatpush.bf16.msra.mxu0 %v796
        %818 = vmatpush.bf16.msra.mxu0 %v767
        %819 = vmatpush.bf16.msra.mxu0 %v765
        %820 = vmatpush.bf16.msra.mxu0 %v763
        %821 = vmatpush.bf16.msra.mxu0 %v761
        %822 = vmatpush.bf16.msra.mxu0 %v759
        %823 = vmatpush.bf16.msra.mxu0 %v757
        %824 = vmatpush.bf16.msra.mxu0 %v755
        %825 = vmatmul.bf16.gmra.mxu0 %v786
        %v826 = vpop.f32.mrf.mxu0
        %v827 = vadd.f32 %v706, %v826
        %v828 = vpop.f32.mrf.mxu0
        %v829 = vadd.f32 %v706, %v828
        %830 = vmatmul.bf16.gmra.mxu0 %v789
        %v831 = vpop.f32.mrf.mxu0
        %v832 = vadd.f32 %v706, %v831
        %v833 = vpop.f32.mrf.mxu0
        %v834 = vadd.f32 %v706, %v833
        %835 = vdwg.mxu0
        %v836 = vmax.f32 %v808, 0.0
        %v837 = vmax.f32 %v827, 0.0
        %v838 = vmax.f32 %v810, 0.0
        %v839 = vmax.f32 %v829, 0.0
        %v840 = vmax.f32 %v813, 0.0
        %v841 = vmax.f32 %v832, 0.0
        %v842 = vmax.f32 %v815, 0.0
        %v843 = vmax.f32 %v834, 0.0
        %v844 = vpack.c.bf16 %v838, %v836
        %v845 = vpack.c.bf16 %v839, %v837
        %v846 = vpack.c.bf16 %v842, %v840
        %v847 = vpack.c.bf16 %v843, %v841
        %v848 = vld [vmem:[%s5] sm:$0xff]
        %v849 = vld [vmem:[%s5 + $0x8] sm:$0xff]
        %v850 = vld [vmem:[%s5 + $0x10] sm:$0xff]
        %v851 = vld [vmem:[%s5 + $0x18] sm:$0xff]
        %v852 = vld [vmem:[%s5 + $0x20] sm:$0xff]
        %v853 = vld [vmem:[%s5 + $0x28] sm:$0xff]
        %v854 = vld [vmem:[%s5 + $0x30] sm:$0xff]
        %v855 = vld [vmem:[%s5 + $0x38] sm:$0xff]
        %v856 = vld [vmem:[%s5 + $0x40] sm:$0xff]
        %v857 = vld [vmem:[%s5 + $0x48] sm:$0xff]
        %v858 = vld [vmem:[%s5 + $0x50] sm:$0xff]
        %v859 = vld [vmem:[%s5 + $0x58] sm:$0xff]
        %v860 = vld [vmem:[%s5 + $0x60] sm:$0xff]
        %v861 = vld [vmem:[%s5 + $0x68] sm:$0xff]
        %v862 = vld [vmem:[%s5 + $0x70] sm:$0xff]
        %v863 = vld [vmem:[%s5 + $0x78] sm:$0xff]
        %v864 = vld [vmem:[%s5 + $0x80] sm:$0xff]
        %v865 = vld [vmem:[%s5 + $0x88] sm:$0xff]
        %v866 = vld [vmem:[%s5 + $0x90] sm:$0xff]
        %v867 = vld [vmem:[%s5 + $0x98] sm:$0xff]
        %v868 = vld [vmem:[%s5 + $0xa0] sm:$0xff]
        %v869 = vld [vmem:[%s5 + $0xa8] sm:$0xff]
        %v870 = vld [vmem:[%s5 + $0xb0] sm:$0xff]
        %v871 = vld [vmem:[%s5 + $0xb8] sm:$0xff]
        %v872 = vld [vmem:[%s5 + $0xc0] sm:$0xff]
        %v873 = vld [vmem:[%s5 + $0xc8] sm:$0xff]
        %v874 = vld [vmem:[%s5 + $0xd0] sm:$0xff]
        %v875 = vld [vmem:[%s5 + $0xd8] sm:$0xff]
        %v876 = vld [vmem:[%s5 + $0xe0] sm:$0xff]
        %v877 = vld [vmem:[%s5 + $0xe8] sm:$0xff]
        %v878 = vld [vmem:[%s5 + $0xf0] sm:$0xff]
        %v879 = vld [vmem:[%s5 + $0xf8] sm:$0xff]
        %v880 = vld [vmem:[%s5 + $0x100] sm:$0xff]
        %v881 = vld [vmem:[%s5 + $0x108] sm:$0xff]
        %v882 = vld [vmem:[%s5 + $0x110] sm:$0xff]
        %v883 = vld [vmem:[%s5 + $0x118] sm:$0xff]
        %v884 = vld [vmem:[%s5 + $0x120] sm:$0xff]
        %v885 = vld [vmem:[%s5 + $0x128] sm:$0xff]
        %v886 = vld [vmem:[%s5 + $0x130] sm:$0xff]
        %v887 = vld [vmem:[%s5 + $0x138] sm:$0xff]
        %v888 = vld [vmem:[%s5 + $0x140] sm:$0xff]
        %v889 = vld [vmem:[%s5 + $0x148] sm:$0xff]
        %v890 = vld [vmem:[%s5 + $0x150] sm:$0xff]
        %v891 = vld [vmem:[%s5 + $0x158] sm:$0xff]
        %v892 = vld [vmem:[%s5 + $0x160] sm:$0xff]
        %v893 = vld [vmem:[%s5 + $0x168] sm:$0xff]
        %v894 = vld [vmem:[%s5 + $0x170] sm:$0xff]
        %v895 = vld [vmem:[%s5 + $0x178] sm:$0xff]
        %v896 = vld [vmem:[%s5 + $0x180] sm:$0xff]
        %v897 = vld [vmem:[%s5 + $0x188] sm:$0xff]
        %v898 = vld [vmem:[%s5 + $0x190] sm:$0xff]
        %v899 = vld [vmem:[%s5 + $0x198] sm:$0xff]
        %v900 = vld [vmem:[%s5 + $0x1a0] sm:$0xff]
        %v901 = vld [vmem:[%s5 + $0x1a8] sm:$0xff]
        %v902 = vld [vmem:[%s5 + $0x1b0] sm:$0xff]
        %v903 = vld [vmem:[%s5 + $0x1b8] sm:$0xff]
        %v904 = vld [vmem:[%s5 + $0x1c0] sm:$0xff]
        %v905 = vld [vmem:[%s5 + $0x1c8] sm:$0xff]
        %v906 = vld [vmem:[%s5 + $0x1d0] sm:$0xff]
        %v907 = vld [vmem:[%s5 + $0x1d8] sm:$0xff]
        %v908 = vld [vmem:[%s6] sm:$0xf]
        %v910 = vperm.slane %v908, 0
        %v911 = vperm.slane %v908, 1
        %v912 = vperm.slane %v908, 2
        %v913 = vperm.slane %v908, 3
        %v978 = vunpack.c.l.b16 %v848
        %v979 = vunpack.c.h.b16 %v848
        %v980 = vunpack.c.l.b16 %v849
        %v981 = vunpack.c.h.b16 %v849
        %v982 = vunpack.c.l.b16 %v850
        %v983 = vunpack.c.h.b16 %v850
        %v984 = vunpack.c.l.b16 %v851
        %v985 = vunpack.c.h.b16 %v851
        %v986 = vunpack.c.l.b16 %v852
        %v987 = vunpack.c.h.b16 %v852
        %v988 = vunpack.c.l.b16 %v853
        %v989 = vunpack.c.h.b16 %v853
        %v990 = vunpack.c.l.b16 %v854
        %v991 = vunpack.c.h.b16 %v854
        %v992 = vunpack.c.l.b16 %v855
        %v993 = vunpack.c.h.b16 %v855
        %v994 = vunpack.c.l.b16 %v856
        %v995 = vunpack.c.h.b16 %v856
        %v996 = vunpack.c.l.b16 %v857
        %v997 = vunpack.c.h.b16 %v857
        %v998 = vunpack.c.l.b16 %v858
        %v999 = vunpack.c.h.b16 %v858
        %v1000 = vunpack.c.l.b16 %v859
        %v1001 = vunpack.c.h.b16 %v859
        %v1002 = vunpack.c.l.b16 %v860
        %v1003 = vunpack.c.h.b16 %v860
        %v1004 = vunpack.c.l.b16 %v861
        %v1005 = vunpack.c.h.b16 %v861
        %v1006 = vunpack.c.l.b16 %v862
        %v1007 = vunpack.c.h.b16 %v862
        %v1008 = vunpack.c.l.b16 %v863
        %v1009 = vunpack.c.h.b16 %v863
        %v1010 = vunpack.c.l.b16 %v864
        %v1011 = vunpack.c.h.b16 %v864
        %v1012 = vunpack.c.l.b16 %v865
        %v1013 = vunpack.c.h.b16 %v865
        %v1014 = vunpack.c.l.b16 %v866
        %v1015 = vunpack.c.h.b16 %v866
        %v1016 = vunpack.c.l.b16 %v867
        %v1017 = vunpack.c.h.b16 %v867
        %v1018 = vunpack.c.l.b16 %v868
        %v1019 = vunpack.c.h.b16 %v868
        %v1020 = vunpack.c.l.b16 %v869
        %v1021 = vunpack.c.h.b16 %v869
        %v1022 = vunpack.c.l.b16 %v870
        %v1023 = vunpack.c.h.b16 %v870
        %v1024 = vunpack.c.l.b16 %v871
        %v1025 = vunpack.c.h.b16 %v871
        %v1026 = vunpack.c.l.b16 %v872
        %v1027 = vunpack.c.h.b16 %v872
        %v1028 = vunpack.c.l.b16 %v873
        %v1029 = vunpack.c.h.b16 %v873
        %v1030 = vunpack.c.l.b16 %v874
        %v1031 = vunpack.c.h.b16 %v874
        %v1032 = vunpack.c.l.b16 %v875
        %v1033 = vunpack.c.h.b16 %v875
        %v1034 = vunpack.c.l.b16 %v876
        %v1035 = vunpack.c.h.b16 %v876
        %v1036 = vunpack.c.l.b16 %v877
        %v1037 = vunpack.c.h.b16 %v877
        %v1038 = vunpack.c.l.b16 %v878
        %v1039 = vunpack.c.h.b16 %v878
        %v1040 = vunpack.c.l.b16 %v879
        %v1041 = vunpack.c.h.b16 %v879
        %v1042 = vunpack.c.l.b16 %v880
        %v1043 = vunpack.c.h.b16 %v880
        %v1044 = vunpack.c.l.b16 %v881
        %v1045 = vunpack.c.h.b16 %v881
        %v1046 = vunpack.c.l.b16 %v882
        %v1047 = vunpack.c.h.b16 %v882
        %v1048 = vunpack.c.l.b16 %v883
        %v1049 = vunpack.c.h.b16 %v883
        %v1050 = vunpack.c.l.b16 %v884
        %v1051 = vunpack.c.h.b16 %v884
        %v1052 = vunpack.c.l.b16 %v885
        %v1053 = vunpack.c.h.b16 %v885
        %v1054 = vunpack.c.l.b16 %v886
        %v1055 = vunpack.c.h.b16 %v886
        %v1056 = vunpack.c.l.b16 %v887
        %v1057 = vunpack.c.h.b16 %v887
        %v1058 = vunpack.c.l.b16 %v888
        %v1059 = vunpack.c.h.b16 %v888
        %v1060 = vunpack.c.l.b16 %v889
        %v1061 = vunpack.c.h.b16 %v889
        %v1062 = vunpack.c.l.b16 %v890
        %v1063 = vunpack.c.h.b16 %v890
        %v1064 = vunpack.c.l.b16 %v891
        %v1065 = vunpack.c.h.b16 %v891
        %v1066 = vunpack.c.l.b16 %v892
        %v1067 = vunpack.c.h.b16 %v892
        %v1068 = vunpack.c.l.b16 %v893
        %v1069 = vunpack.c.h.b16 %v893
        %v1070 = vunpack.c.l.b16 %v894
        %v1071 = vunpack.c.h.b16 %v894
        %v1072 = vunpack.c.l.b16 %v895
        %v1073 = vunpack.c.h.b16 %v895
        %v1074 = vunpack.c.l.b16 %v896
        %v1075 = vunpack.c.h.b16 %v896
        %v1076 = vunpack.c.l.b16 %v897
        %v1077 = vunpack.c.h.b16 %v897
        %v1078 = vunpack.c.l.b16 %v898
        %v1079 = vunpack.c.h.b16 %v898
        %v1080 = vunpack.c.l.b16 %v899
        %v1081 = vunpack.c.h.b16 %v899
        %v1082 = vunpack.c.l.b16 %v900
        %v1083 = vunpack.c.h.b16 %v900
        %v1084 = vunpack.c.l.b16 %v901
        %v1085 = vunpack.c.h.b16 %v901
        %v1086 = vunpack.c.l.b16 %v902
        %v1087 = vunpack.c.h.b16 %v902
        %v1088 = vunpack.c.l.b16 %v903
        %v1089 = vunpack.c.h.b16 %v903
        %v1090 = vunpack.c.l.b16 %v904
        %v1091 = vunpack.c.h.b16 %v904
        %v1092 = vunpack.c.l.b16 %v905
        %v1093 = vunpack.c.h.b16 %v905
        %v1094 = vunpack.c.l.b16 %v906
        %v1095 = vunpack.c.h.b16 %v906
        %v1096 = vunpack.c.l.b16 %v907
        %v1097 = vunpack.c.h.b16 %v907
        %v1098 = vpack.c.b16 %v982, %v978
        %v1099 = vpack.c.b16 %v983, %v979
        %v1100 = vpack.c.b16 %v984, %v980
        %v1101 = vpack.c.b16 %v985, %v981
        %v1102 = vpack.c.b16 %v990, %v986
        %v1103 = vpack.c.b16 %v991, %v987
        %v1104 = vpack.c.b16 %v992, %v988
        %v1105 = vpack.c.b16 %v993, %v989
        %v1106 = vpack.c.b16 %v998, %v994
        %v1107 = vpack.c.b16 %v999, %v995
        %v1108 = vpack.c.b16 %v1000, %v996
        %v1109 = vpack.c.b16 %v1001, %v997
        %v1110 = vpack.c.b16 %v1006, %v1002
        %v1111 = vpack.c.b16 %v1007, %v1003
        %v1112 = vpack.c.b16 %v1008, %v1004
        %v1113 = vpack.c.b16 %v1009, %v1005
        %v1114 = vpack.c.b16 %v1014, %v1010
        %v1115 = vpack.c.b16 %v1015, %v1011
        %v1116 = vpack.c.b16 %v1016, %v1012
        %v1117 = vpack.c.b16 %v1017, %v1013
        %v1118 = vpack.c.b16 %v1022, %v1018
        %v1119 = vpack.c.b16 %v1023, %v1019
        %v1120 = vpack.c.b16 %v1024, %v1020
        %v1121 = vpack.c.b16 %v1025, %v1021
        %v1122 = vpack.c.b16 %v1030, %v1026
        %v1123 = vpack.c.b16 %v1031, %v1027
        %v1124 = vpack.c.b16 %v1032, %v1028
        %v1125 = vpack.c.b16 %v1033, %v1029
        %v1126 = vpack.c.b16 %v1038, %v1034
        %v1127 = vpack.c.b16 %v1039, %v1035
        %v1128 = vpack.c.b16 %v1040, %v1036
        %v1129 = vpack.c.b16 %v1041, %v1037
        %v1130 = vpack.c.b16 %v1046, %v1042
        %v1131 = vpack.c.b16 %v1047, %v1043
        %v1132 = vpack.c.b16 %v1048, %v1044
        %v1133 = vpack.c.b16 %v1049, %v1045
        %v1134 = vpack.c.b16 %v1054, %v1050
        %v1135 = vpack.c.b16 %v1055, %v1051
        %v1136 = vpack.c.b16 %v1056, %v1052
        %v1137 = vpack.c.b16 %v1057, %v1053
        %v1138 = vpack.c.b16 %v1062, %v1058
        %v1139 = vpack.c.b16 %v1063, %v1059
        %v1140 = vpack.c.b16 %v1064, %v1060
        %v1141 = vpack.c.b16 %v1065, %v1061
        %v1142 = vpack.c.b16 %v1070, %v1066
        %v1143 = vpack.c.b16 %v1071, %v1067
        %v1144 = vpack.c.b16 %v1072, %v1068
        %v1145 = vpack.c.b16 %v1073, %v1069
        %v1146 = vpack.c.b16 %v1078, %v1074
        %v1147 = vpack.c.b16 %v1079, %v1075
        %v1148 = vpack.c.b16 %v1080, %v1076
        %v1149 = vpack.c.b16 %v1081, %v1077
        %v1150 = vpack.c.b16 %v1086, %v1082
        %v1151 = vpack.c.b16 %v1087, %v1083
        %v1152 = vpack.c.b16 %v1088, %v1084
        %v1153 = vpack.c.b16 %v1089, %v1085
        %v1154 = vpack.c.b16 %v1094, %v1090
        %v1155 = vpack.c.b16 %v1095, %v1091
        %v1156 = vpack.c.b16 %v1096, %v1092
        %v1157 = vpack.c.b16 %v1097, %v1093
        %vm1218 = vcmask 916480
        %v1220 = vsel %vm1218, %v845, 0
        %v1223 = vsel %vm1218, %v847, 0
        %1225 = vmatpush.bf16.msra.mxu0 %v1126
        %1226 = vmatpush.bf16.msra.mxu0 %v1122
        %1227 = vmatpush.bf16.msra.mxu0 %v1118
        %1228 = vmatpush.bf16.msra.mxu0 %v1114
        %1229 = vmatpush.bf16.msra.mxu0 %v1110
        %1230 = vmatpush.bf16.msra.mxu0 %v1106
        %1231 = vmatpush.bf16.msra.mxu0 %v1102
        %1232 = vmatpush.bf16.msra.mxu0 %v1098
        %1233 = vmatmul.bf16.gmra.mxu0 %v844
        %v1234 = vpop.f32.mrf.mxu0
        %v1235 = vadd.f32 %v910, %v1234
        %v1236 = vpop.f32.mrf.mxu0
        %v1237 = vadd.f32 %v910, %v1236
        %1238 = vmatmul.bf16.gmra.mxu0 %v846
        %v1239 = vpop.f32.mrf.mxu0
        %v1240 = vadd.f32 %v910, %v1239
        %v1241 = vpop.f32.mrf.mxu0
        %v1242 = vadd.f32 %v910, %v1241
        %1243 = vdwg.mxu0
        %1244 = vmatpush.bf16.msra.mxu0 0
        %1245 = vmatpush.bf16.msra.mxu0 %v1154
        %1246 = vmatpush.bf16.msra.mxu0 %v1150
        %1247 = vmatpush.bf16.msra.mxu0 %v1146
        %1248 = vmatpush.bf16.msra.mxu0 %v1142
        %1249 = vmatpush.bf16.msra.mxu0 %v1138
        %1250 = vmatpush.bf16.msra.mxu0 %v1134
        %1251 = vmatpush.bf16.msra.mxu0 %v1130
        %1252 = vmatmul.bf16.gmra.mxu0 %v1220
        %v1253 = vpop.f32.mrf.mxu0
        %v1254 = vadd.f32 %v1235, %v1253
        %v1255 = vpop.f32.mrf.mxu0
        %v1256 = vadd.f32 %v1237, %v1255
        %1257 = vmatmul.bf16.gmra.mxu0 %v1223
        %v1258 = vpop.f32.mrf.mxu0
        %v1259 = vadd.f32 %v1240, %v1258
        %v1260 = vpop.f32.mrf.mxu0
        %v1261 = vadd.f32 %v1242, %v1260
        %1262 = vdwg.mxu0
        %1263 = vmatpush.bf16.msra.mxu0 %v1127
        %1264 = vmatpush.bf16.msra.mxu0 %v1123
        %1265 = vmatpush.bf16.msra.mxu0 %v1119
        %1266 = vmatpush.bf16.msra.mxu0 %v1115
        %1267 = vmatpush.bf16.msra.mxu0 %v1111
        %1268 = vmatpush.bf16.msra.mxu0 %v1107
        %1269 = vmatpush.bf16.msra.mxu0 %v1103
        %1270 = vmatpush.bf16.msra.mxu0 %v1099
        %1271 = vmatmul.bf16.gmra.mxu0 %v844
        %v1272 = vpop.f32.mrf.mxu0
        %v1273 = vadd.f32 %v911, %v1272
        %v1274 = vpop.f32.mrf.mxu0
        %v1275 = vadd.f32 %v911, %v1274
        %1276 = vmatmul.bf16.gmra.mxu0 %v846
        %v1277 = vpop.f32.mrf.mxu0
        %v1278 = vadd.f32 %v911, %v1277
        %v1279 = vpop.f32.mrf.mxu0
        %v1280 = vadd.f32 %v911, %v1279
        %1281 = vdwg.mxu0
        %1282 = vmatpush.bf16.msra.mxu0 0
        %1283 = vmatpush.bf16.msra.mxu0 %v1155
        %1284 = vmatpush.bf16.msra.mxu0 %v1151
        %1285 = vmatpush.bf16.msra.mxu0 %v1147
        %1286 = vmatpush.bf16.msra.mxu0 %v1143
        %1287 = vmatpush.bf16.msra.mxu0 %v1139
        %1288 = vmatpush.bf16.msra.mxu0 %v1135
        %1289 = vmatpush.bf16.msra.mxu0 %v1131
        %1290 = vmatmul.bf16.gmra.mxu0 %v1220
        %v1291 = vpop.f32.mrf.mxu0
        %v1292 = vadd.f32 %v1273, %v1291
        %v1293 = vpop.f32.mrf.mxu0
        %v1294 = vadd.f32 %v1275, %v1293
        %1295 = vmatmul.bf16.gmra.mxu0 %v1223
        %v1296 = vpop.f32.mrf.mxu0
        %v1297 = vadd.f32 %v1278, %v1296
        %v1298 = vpop.f32.mrf.mxu0
        %v1299 = vadd.f32 %v1280, %v1298
        %1300 = vdwg.mxu0
        %1301 = vmatpush.bf16.msra.mxu0 %v1128
        %1302 = vmatpush.bf16.msra.mxu0 %v1124
        %1303 = vmatpush.bf16.msra.mxu0 %v1120
        %1304 = vmatpush.bf16.msra.mxu0 %v1116
        %1305 = vmatpush.bf16.msra.mxu0 %v1112
        %1306 = vmatpush.bf16.msra.mxu0 %v1108
        %1307 = vmatpush.bf16.msra.mxu0 %v1104
        %1308 = vmatpush.bf16.msra.mxu0 %v1100
        %1309 = vmatmul.bf16.gmra.mxu0 %v844
        %v1310 = vpop.f32.mrf.mxu0
        %v1311 = vadd.f32 %v912, %v1310
        %v1312 = vpop.f32.mrf.mxu0
        %v1313 = vadd.f32 %v912, %v1312
        %1314 = vmatmul.bf16.gmra.mxu0 %v846
        %v1315 = vpop.f32.mrf.mxu0
        %v1316 = vadd.f32 %v912, %v1315
        %v1317 = vpop.f32.mrf.mxu0
        %v1318 = vadd.f32 %v912, %v1317
        %1319 = vdwg.mxu0
        %1320 = vmatpush.bf16.msra.mxu0 0
        %1321 = vmatpush.bf16.msra.mxu0 %v1156
        %1322 = vmatpush.bf16.msra.mxu0 %v1152
        %1323 = vmatpush.bf16.msra.mxu0 %v1148
        %1324 = vmatpush.bf16.msra.mxu0 %v1144
        %1325 = vmatpush.bf16.msra.mxu0 %v1140
        %1326 = vmatpush.bf16.msra.mxu0 %v1136
        %1327 = vmatpush.bf16.msra.mxu0 %v1132
        %1328 = vmatmul.bf16.gmra.mxu0 %v1220
        %v1329 = vpop.f32.mrf.mxu0
        %v1330 = vadd.f32 %v1311, %v1329
        %v1331 = vpop.f32.mrf.mxu0
        %v1332 = vadd.f32 %v1313, %v1331
        %1333 = vmatmul.bf16.gmra.mxu0 %v1223
        %v1334 = vpop.f32.mrf.mxu0
        %v1335 = vadd.f32 %v1316, %v1334
        %v1336 = vpop.f32.mrf.mxu0
        %v1337 = vadd.f32 %v1318, %v1336
        %1338 = vdwg.mxu0
        %1339 = vmatpush.bf16.msra.mxu0 %v1129
        %1340 = vmatpush.bf16.msra.mxu0 %v1125
        %1341 = vmatpush.bf16.msra.mxu0 %v1121
        %1342 = vmatpush.bf16.msra.mxu0 %v1117
        %1343 = vmatpush.bf16.msra.mxu0 %v1113
        %1344 = vmatpush.bf16.msra.mxu0 %v1109
        %1345 = vmatpush.bf16.msra.mxu0 %v1105
        %1346 = vmatpush.bf16.msra.mxu0 %v1101
        %1347 = vmatmul.bf16.gmra.mxu0 %v844
        %v1348 = vpop.f32.mrf.mxu0
        %v1349 = vadd.f32 %v913, %v1348
        %v1350 = vpop.f32.mrf.mxu0
        %v1351 = vadd.f32 %v913, %v1350
        %1352 = vmatmul.bf16.gmra.mxu0 %v846
        %v1353 = vpop.f32.mrf.mxu0
        %v1354 = vadd.f32 %v913, %v1353
        %v1355 = vpop.f32.mrf.mxu0
        %v1356 = vadd.f32 %v913, %v1355
        %1357 = vdwg.mxu0
        %1358 = vmatpush.bf16.msra.mxu0 0
        %1359 = vmatpush.bf16.msra.mxu0 %v1157
        %1360 = vmatpush.bf16.msra.mxu0 %v1153
        %1361 = vmatpush.bf16.msra.mxu0 %v1149
        %1362 = vmatpush.bf16.msra.mxu0 %v1145
        %1363 = vmatpush.bf16.msra.mxu0 %v1141
        %1364 = vmatpush.bf16.msra.mxu0 %v1137
        %1365 = vmatpush.bf16.msra.mxu0 %v1133
        %1366 = vmatmul.bf16.gmra.mxu0 %v1220
        %v1367 = vpop.f32.mrf.mxu0
        %v1368 = vadd.f32 %v1349, %v1367
        %v1369 = vpop.f32.mrf.mxu0
        %v1370 = vadd.f32 %v1351, %v1369
        %1371 = vmatmul.bf16.gmra.mxu0 %v1223
        %v1372 = vpop.f32.mrf.mxu0
        %v1373 = vadd.f32 %v1354, %v1372
        %v1374 = vpop.f32.mrf.mxu0
        %v1375 = vadd.f32 %v1356, %v1374
        %1376 = vdwg.mxu0
        %v1377 = vmax.f32 %v1254, 0.0
        %v1378 = vmax.f32 %v1292, 0.0
        %v1379 = vmax.f32 %v1330, 0.0
        %v1380 = vmax.f32 %v1368, 0.0
        %v1381 = vmax.f32 %v1256, 0.0
        %v1382 = vmax.f32 %v1294, 0.0
        %v1383 = vmax.f32 %v1332, 0.0
        %v1384 = vmax.f32 %v1370, 0.0
        %v1385 = vmax.f32 %v1259, 0.0
        %v1386 = vmax.f32 %v1297, 0.0
        %v1387 = vmax.f32 %v1335, 0.0
        %v1388 = vmax.f32 %v1373, 0.0
        %v1389 = vmax.f32 %v1261, 0.0
        %v1390 = vmax.f32 %v1299, 0.0
        %v1391 = vmax.f32 %v1337, 0.0
        %v1392 = vmax.f32 %v1375, 0.0
        %v1393 = vpack.c.bf16 %v1381, %v1377
        %v1394 = vpack.c.bf16 %v1382, %v1378
        %v1395 = vpack.c.bf16 %v1383, %v1379
        %v1396 = vpack.c.bf16 %v1384, %v1380
        %v1397 = vpack.c.bf16 %v1389, %v1385
        %v1398 = vpack.c.bf16 %v1390, %v1386
        %v1399 = vpack.c.bf16 %v1391, %v1387
        %v1400 = vpack.c.bf16 %v1392, %v1388
        %v1401 = vld [vmem:[%s7] sm:$0xf]
        %v1402 = vld [vmem:[%s7 + $0x4] sm:$0xf]
        %v1403 = vld [vmem:[%s7 + $0x8] sm:$0xf]
        %v1404 = vld [vmem:[%s7 + $0xc] sm:$0xf]
        %v1405 = vld [vmem:[%s7 + $0x10] sm:$0xf]
        %v1406 = vld [vmem:[%s7 + $0x14] sm:$0xf]
        %v1407 = vld [vmem:[%s7 + $0x18] sm:$0xf]
        %v1408 = vld [vmem:[%s7 + $0x1c] sm:$0xf]
        %v1409 = vld [vmem:[%s7 + $0x20] sm:$0xf]
        %v1410 = vld [vmem:[%s7 + $0x24] sm:$0xf]
        %v1411 = vld [vmem:[%s7 + $0x28] sm:$0xf]
        %v1412 = vld [vmem:[%s7 + $0x2c] sm:$0xf]
        %v1413 = vld [vmem:[%s7 + $0x30] sm:$0xf]
        %v1414 = vld [vmem:[%s7 + $0x34] sm:$0xf]
        %v1415 = vld [vmem:[%s7 + $0x38] sm:$0xf]
        %v1416 = vld [vmem:[%s7 + $0x3c] sm:$0xf]
        %v1417 = vld [vmem:[%s7 + $0x40] sm:$0xf]
        %v1418 = vld [vmem:[%s7 + $0x44] sm:$0xf]
        %v1419 = vld [vmem:[%s7 + $0x48] sm:$0xf]
        %v1420 = vld [vmem:[%s7 + $0x4c] sm:$0xf]
        %v1421 = vld [vmem:[%s7 + $0x50] sm:$0xf]
        %v1422 = vld [vmem:[%s7 + $0x54] sm:$0xf]
        %v1423 = vld [vmem:[%s7 + $0x58] sm:$0xf]
        %v1424 = vld [vmem:[%s7 + $0x5c] sm:$0xf]
        %v1425 = vld [vmem:[%s7 + $0x60] sm:$0xf]
        %v1426 = vld [vmem:[%s7 + $0x64] sm:$0xf]
        %v1427 = vld [vmem:[%s7 + $0x68] sm:$0xf]
        %v1428 = vld [vmem:[%s7 + $0x6c] sm:$0xf]
        %v1429 = vld [vmem:[%s7 + $0x70] sm:$0xf]
        %v1430 = vld [vmem:[%s7 + $0x74] sm:$0xf]
        %v1431 = vld [vmem:[%s7 + $0x78] sm:$0xf]
        %v1432 = vld [vmem:[%s7 + $0x7c] sm:$0xf]
        %v1433 = vld [vmem:[%s7 + $0x80] sm:$0xf]
        %v1434 = vld [vmem:[%s7 + $0x84] sm:$0xf]
        %v1435 = vld [vmem:[%s7 + $0x88] sm:$0xf]
        %v1436 = vld [vmem:[%s7 + $0x8c] sm:$0xf]
        %v1437 = vld [vmem:[%s7 + $0x90] sm:$0xf]
        %v1438 = vld [vmem:[%s7 + $0x94] sm:$0xf]
        %v1439 = vld [vmem:[%s7 + $0x98] sm:$0xf]
        %v1440 = vld [vmem:[%s7 + $0x9c] sm:$0xf]
        %v1441 = vld [vmem:[%s7 + $0xa0] sm:$0xf]
        %v1442 = vld [vmem:[%s7 + $0xa4] sm:$0xf]
        %v1443 = vld [vmem:[%s7 + $0xa8] sm:$0xf]
        %v1444 = vld [vmem:[%s7 + $0xac] sm:$0xf]
        %v1445 = vld [vmem:[%s7 + $0xb0] sm:$0xf]
        %v1446 = vld [vmem:[%s7 + $0xb4] sm:$0xf]
        %v1447 = vld [vmem:[%s7 + $0xb8] sm:$0xf]
        %v1448 = vld [vmem:[%s7 + $0xbc] sm:$0xf]
        %v1449 = vld [vmem:[%s7 + $0xc0] sm:$0xf]
        %v1450 = vld [vmem:[%s7 + $0xc4] sm:$0xf]
        %v1451 = vld [vmem:[%s7 + $0xc8] sm:$0xf]
        %v1452 = vld [vmem:[%s7 + $0xcc] sm:$0xf]
        %v1453 = vld [vmem:[%s7 + $0xd0] sm:$0xf]
        %v1454 = vld [vmem:[%s7 + $0xd4] sm:$0xf]
        %v1455 = vld [vmem:[%s7 + $0xd8] sm:$0xf]
        %v1456 = vld [vmem:[%s7 + $0xdc] sm:$0xf]
        %v1457 = vld [vmem:[%s7 + $0xe0] sm:$0xf]
        %v1458 = vld [vmem:[%s7 + $0xe4] sm:$0xf]
        %v1459 = vld [vmem:[%s7 + $0xe8] sm:$0xf]
        %v1460 = vld [vmem:[%s7 + $0xec] sm:$0xf]
        %v1461 = vld [vmem:[#allocation8] sm:$0x1]
        %v1463 = vperm.slane %v1461, 0
        %v1525 = vunpack.c.l.b16 %v1401
        %v1526 = vunpack.c.l.b16 %v1402
        %v1527 = vunpack.c.l.b16 %v1403
        %v1528 = vunpack.c.l.b16 %v1404
        %v1529 = vunpack.c.l.b16 %v1405
        %v1530 = vunpack.c.l.b16 %v1406
        %v1531 = vunpack.c.l.b16 %v1407
        %v1532 = vunpack.c.l.b16 %v1408
        %v1533 = vunpack.c.l.b16 %v1409
        %v1534 = vunpack.c.l.b16 %v1410
        %v1535 = vunpack.c.l.b16 %v1411
        %v1536 = vunpack.c.l.b16 %v1412
        %v1537 = vunpack.c.l.b16 %v1413
        %v1538 = vunpack.c.l.b16 %v1414
        %v1539 = vunpack.c.l.b16 %v1415
        %v1540 = vunpack.c.l.b16 %v1416
        %v1541 = vunpack.c.l.b16 %v1417
        %v1542 = vunpack.c.l.b16 %v1418
        %v1543 = vunpack.c.l.b16 %v1419
        %v1544 = vunpack.c.l.b16 %v1420
        %v1545 = vunpack.c.l.b16 %v1421
        %v1546 = vunpack.c.l.b16 %v1422
        %v1547 = vunpack.c.l.b16 %v1423
        %v1548 = vunpack.c.l.b16 %v1424
        %v1549 = vunpack.c.l.b16 %v1425
        %v1550 = vunpack.c.l.b16 %v1426
        %v1551 = vunpack.c.l.b16 %v1427
        %v1552 = vunpack.c.l.b16 %v1428
        %v1553 = vunpack.c.l.b16 %v1429
        %v1554 = vunpack.c.l.b16 %v1430
        %v1555 = vunpack.c.l.b16 %v1431
        %v1556 = vunpack.c.l.b16 %v1432
        %v1557 = vunpack.c.l.b16 %v1433
        %v1558 = vunpack.c.l.b16 %v1434
        %v1559 = vunpack.c.l.b16 %v1435
        %v1560 = vunpack.c.l.b16 %v1436
        %v1561 = vunpack.c.l.b16 %v1437
        %v1562 = vunpack.c.l.b16 %v1438
        %v1563 = vunpack.c.l.b16 %v1439
        %v1564 = vunpack.c.l.b16 %v1440
        %v1565 = vunpack.c.l.b16 %v1441
        %v1566 = vunpack.c.l.b16 %v1442
        %v1567 = vunpack.c.l.b16 %v1443
        %v1568 = vunpack.c.l.b16 %v1444
        %v1569 = vunpack.c.l.b16 %v1445
        %v1570 = vunpack.c.l.b16 %v1446
        %v1571 = vunpack.c.l.b16 %v1447
        %v1572 = vunpack.c.l.b16 %v1448
        %v1573 = vunpack.c.l.b16 %v1449
        %v1574 = vunpack.c.l.b16 %v1450
        %v1575 = vunpack.c.l.b16 %v1451
        %v1576 = vunpack.c.l.b16 %v1452
        %v1577 = vunpack.c.l.b16 %v1453
        %v1578 = vunpack.c.l.b16 %v1454
        %v1579 = vunpack.c.l.b16 %v1455
        %v1580 = vunpack.c.l.b16 %v1456
        %v1581 = vunpack.c.l.b16 %v1457
        %v1582 = vunpack.c.l.b16 %v1458
        %v1583 = vunpack.c.l.b16 %v1459
        %v1584 = vunpack.c.l.b16 %v1460
        %v1585 = vpack.c.b16 %v1526, %v1525
        %v1586 = vpack.c.b16 %v1528, %v1527
        %v1587 = vpack.c.b16 %v1530, %v1529
        %v1588 = vpack.c.b16 %v1532, %v1531
        %v1589 = vpack.c.b16 %v1534, %v1533
        %v1590 = vpack.c.b16 %v1536, %v1535
        %v1591 = vpack.c.b16 %v1538, %v1537
        %v1592 = vpack.c.b16 %v1540, %v1539
        %v1593 = vpack.c.b16 %v1542, %v1541
        %v1594 = vpack.c.b16 %v1544, %v1543
        %v1595 = vpack.c.b16 %v1546, %v1545
        %v1596 = vpack.c.b16 %v1548, %v1547
        %v1597 = vpack.c.b16 %v1550, %v1549
        %v1598 = vpack.c.b16 %v1552, %v1551
        %v1599 = vpack.c.b16 %v1554, %v1553
        %v1600 = vpack.c.b16 %v1556, %v1555
        %v1601 = vpack.c.b16 %v1558, %v1557
        %v1602 = vpack.c.b16 %v1560, %v1559
        %v1603 = vpack.c.b16 %v1562, %v1561
        %v1604 = vpack.c.b16 %v1564, %v1563
        %v1605 = vpack.c.b16 %v1566, %v1565
        %v1606 = vpack.c.b16 %v1568, %v1567
        %v1607 = vpack.c.b16 %v1570, %v1569
        %v1608 = vpack.c.b16 %v1572, %v1571
        %v1609 = vpack.c.b16 %v1574, %v1573
        %v1610 = vpack.c.b16 %v1576, %v1575
        %v1611 = vpack.c.b16 %v1578, %v1577
        %v1612 = vpack.c.b16 %v1580, %v1579
        %v1613 = vpack.c.b16 %v1582, %v1581
        %v1614 = vpack.c.b16 %v1584, %v1583
        %vm1645 = vcmask 785408
        %v1647 = vsel %vm1645, %v1396, 0
        %v1650 = vsel %vm1645, %v1400, 0
        %1652 = vmatpush.bf16.msra.mxu0 %v1592
        %1653 = vmatpush.bf16.msra.mxu0 %v1591
        %1654 = vmatpush.bf16.msra.mxu0 %v1590
        %1655 = vmatpush.bf16.msra.mxu0 %v1589
        %1656 = vmatpush.bf16.msra.mxu0 %v1588
        %1657 = vmatpush.bf16.msra.mxu0 %v1587
        %1658 = vmatpush.bf16.msra.mxu0 %v1586
        %1659 = vmatpush.bf16.msra.mxu0 %v1585
        %1660 = vmatmul.bf16.gmra.mxu0 %v1393
        %v1661 = vpop.f32.mrf.mxu0
        %v1662 = vadd.f32 %v1463, %v1661
        %v1663 = vpop.f32.mrf.mxu0
        %v1664 = vadd.f32 %v1463, %v1663
        %1665 = vmatmul.bf16.gmra.mxu0 %v1397
        %v1666 = vpop.f32.mrf.mxu0
        %v1667 = vadd.f32 %v1463, %v1666
        %v1668 = vpop.f32.mrf.mxu0
        %v1669 = vadd.f32 %v1463, %v1668
        %1670 = vdwg.mxu0
        %1671 = vmatpush.bf16.msra.mxu0 %v1600
        %1672 = vmatpush.bf16.msra.mxu0 %v1599
        %1673 = vmatpush.bf16.msra.mxu0 %v1598
        %1674 = vmatpush.bf16.msra.mxu0 %v1597
        %1675 = vmatpush.bf16.msra.mxu0 %v1596
        %1676 = vmatpush.bf16.msra.mxu0 %v1595
        %1677 = vmatpush.bf16.msra.mxu0 %v1594
        %1678 = vmatpush.bf16.msra.mxu0 %v1593
        %1679 = vmatmul.bf16.gmra.mxu0 %v1394
        %v1680 = vpop.f32.mrf.mxu0
        %v1681 = vadd.f32 %v1662, %v1680
        %v1682 = vpop.f32.mrf.mxu0
        %v1683 = vadd.f32 %v1664, %v1682
        %1684 = vmatmul.bf16.gmra.mxu0 %v1398
        %v1685 = vpop.f32.mrf.mxu0
        %v1686 = vadd.f32 %v1667, %v1685
        %v1687 = vpop.f32.mrf.mxu0
        %v1688 = vadd.f32 %v1669, %v1687
        %1689 = vdwg.mxu0
        %1690 = vmatpush.bf16.msra.mxu0 %v1608
        %1691 = vmatpush.bf16.msra.mxu0 %v1607
        %1692 = vmatpush.bf16.msra.mxu0 %v1606
        %1693 = vmatpush.bf16.msra.mxu0 %v1605
        %1694 = vmatpush.bf16.msra.mxu0 %v1604
        %1695 = vmatpush.bf16.msra.mxu0 %v1603
        %1696 = vmatpush.bf16.msra.mxu0 %v1602
        %1697 = vmatpush.bf16.msra.mxu0 %v1601
        %1698 = vmatmul.bf16.gmra.mxu0 %v1395
        %v1699 = vpop.f32.mrf.mxu0
        %v1700 = vadd.f32 %v1681, %v1699
        %v1701 = vpop.f32.mrf.mxu0
        %v1702 = vadd.f32 %v1683, %v1701
        %1703 = vmatmul.bf16.gmra.mxu0 %v1399
        %v1704 = vpop.f32.mrf.mxu0
        %v1705 = vadd.f32 %v1686, %v1704
        %v1706 = vpop.f32.mrf.mxu0
        %v1707 = vadd.f32 %v1688, %v1706
        %1708 = vdwg.mxu0
        %1709 = vmatpush.bf16.msra.mxu0 0
        %1710 = vmatpush.bf16.msra.mxu0 0
        %1711 = vmatpush.bf16.msra.mxu0 %v1614
        %1712 = vmatpush.bf16.msra.mxu0 %v1613
        %1713 = vmatpush.bf16.msra.mxu0 %v1612
        %1714 = vmatpush.bf16.msra.mxu0 %v1611
        %1715 = vmatpush.bf16.msra.mxu0 %v1610
        %1716 = vmatpush.bf16.msra.mxu0 %v1609
        %1717 = vmatmul.bf16.gmra.mxu0 %v1647
        %v1718 = vpop.f32.mrf.mxu0
        %v1719 = vadd.f32 %v1700, %v1718
        %v1720 = vpop.f32.mrf.mxu0
        %v1721 = vadd.f32 %v1702, %v1720
        %1722 = vmatmul.bf16.gmra.mxu0 %v1650
        %v1723 = vpop.f32.mrf.mxu0
        %v1724 = vadd.f32 %v1705, %v1723
        %v1725 = vpop.f32.mrf.mxu0
        %v1726 = vadd.f32 %v1707, %v1725
        %1727 = vdwg.mxu0
        %v1728 = vmax.f32 %v1719, 0.0
        %v1729 = vmax.f32 %v1721, 0.0
        %v1730 = vmax.f32 %v1724, 0.0
        %v1731 = vmax.f32 %v1726, 0.0
        %v1732 = vpack.c.bf16 %v1729, %v1728
        %v1733 = vpack.c.bf16 %v1731, %v1730
        %v1734 = vld [vmem:[%s9] sm:$0xf]
        %v1735 = vld [vmem:[%s9 + $0x4] sm:$0xf]
        %v1736 = vld [vmem:[%s9 + $0x8] sm:$0xf]
        %v1737 = vld [vmem:[%s9 + $0xc] sm:$0xf]
        %v1738 = vld [vmem:[%s9 + $0x10] sm:$0xf]
        %v1739 = vld [vmem:[%s9 + $0x14] sm:$0xf]
        %v1740 = vld [vmem:[%s9 + $0x18] sm:$0xf]
        %v1741 = vld [vmem:[%s9 + $0x1c] sm:$0xf]
        %v1742 = vld [vmem:[%s9 + $0x20] sm:$0xf]
        %v1743 = vld [vmem:[%s9 + $0x24] sm:$0xf]
        %v1744 = vld [vmem:[%s9 + $0x28] sm:$0xf]
        %v1745 = vld [vmem:[%s9 + $0x2c] sm:$0xf]
        %v1746 = vld [vmem:[%s9 + $0x30] sm:$0x3]
        %v1747 = vld [vmem:[#allocation10] sm:$0x1]
        %v1749 = vperm.slane %v1747, 0
        %v1764 = vunpack.c.l.b16 %v1734
        %v1765 = vunpack.c.l.b16 %v1735
        %v1766 = vunpack.c.l.b16 %v1736
        %v1767 = vunpack.c.l.b16 %v1737
        %v1768 = vunpack.c.l.b16 %v1738
        %v1769 = vunpack.c.l.b16 %v1739
        %v1770 = vunpack.c.l.b16 %v1740
        %v1771 = vunpack.c.l.b16 %v1741
        %v1772 = vunpack.c.l.b16 %v1742
        %v1773 = vunpack.c.l.b16 %v1743
        %v1774 = vunpack.c.l.b16 %v1744
        %v1775 = vunpack.c.l.b16 %v1745
        %v1776 = vunpack.c.l.b16 %v1746
        %v1777 = vpack.c.b16 %v1765, %v1764
        %v1778 = vpack.c.b16 %v1767, %v1766
        %v1779 = vpack.c.b16 %v1769, %v1768
        %v1780 = vpack.c.b16 %v1771, %v1770
        %v1781 = vpack.c.b16 %v1773, %v1772
        %v1782 = vpack.c.b16 %v1775, %v1774
        %v1783 = vpack.c.b16 %v1776, %v1776
        %vm1790 = vcmask 818176
        %v1792 = vsel %vm1790, %v1732, 0
        %v1795 = vsel %vm1790, %v1733, 0
        %vm1797 = vcmask 1041408
        %v1799 = vsel %vm1797, %v1783, 0
        %1801 = vmatpush.bf16.msra.mxu0 0
        %1802 = vmatpush.bf16.msra.mxu0 %v1799
        %1803 = vmatpush.bf16.msra.mxu0 %v1782
        %1804 = vmatpush.bf16.msra.mxu0 %v1781
        %1805 = vmatpush.bf16.msra.mxu0 %v1780
        %1806 = vmatpush.bf16.msra.mxu0 %v1779
        %1807 = vmatpush.bf16.msra.mxu0 %v1778
        %1808 = vmatpush.bf16.msra.mxu0 %v1777
        %1809 = vmatmul.bf16.gmra.mxu0 %v1792
        %v1810 = vpop.f32.mrf.mxu0
        %v1811 = vadd.f32 %v1749, %v1810
        %v1812 = vpop.f32.mrf.mxu0
        %v1813 = vadd.f32 %v1749, %v1812
        %1814 = vmatmul.bf16.gmra.mxu0 %v1795
        %v1815 = vpop.f32.mrf.mxu0
        %v1816 = vadd.f32 %v1749, %v1815
        %v1817 = vpop.f32.mrf.mxu0
        %v1818 = vadd.f32 %v1749, %v1817
        %1819 = vdwg.mxu0
        %v1820 = vmax.f32 %v1811, 0.0
        %v1821 = vmax.f32 %v1813, 0.0
        %v1822 = vmax.f32 %v1816, 0.0
        %v1823 = vmax.f32 %v1818, 0.0
        %v1824 = vpack.c.bf16 %v1821, %v1820
        %v1825 = vpack.c.bf16 %v1823, %v1822
        %v1826 = vld [vmem:[%s11] sm:$0xf]
        %v1827 = vld [vmem:[%s11 + $0x4] sm:$0xf]
        %v1828 = vld [vmem:[%s11 + $0x8] sm:$0xf]
        %v1829 = vld [vmem:[%s11 + $0xc] sm:$0xf]
        %v1830 = vld [vmem:[%s11 + $0x10] sm:$0xf]
        %v1831 = vld [vmem:[%s11 + $0x14] sm:$0xf]
        %v1832 = vld [vmem:[%s11 + $0x18] sm:$0x1]
        %v1833 = vld [vmem:[#allocation11] sm:$0x1]
        %v1835 = vperm.slane %v1833, 0
        %v1844 = vunpack.c.l.b16 %v1826
        %v1845 = vunpack.c.l.b16 %v1827
        %v1846 = vunpack.c.l.b16 %v1828
        %v1847 = vunpack.c.l.b16 %v1829
        %v1848 = vunpack.c.l.b16 %v1830
        %v1849 = vunpack.c.l.b16 %v1831
        %v1850 = vunpack.c.l.b16 %v1832
        %v1851 = vpack.c.b16 %v1845, %v1844
        %v1852 = vpack.c.b16 %v1847, %v1846
        %v1853 = vpack.c.b16 %v1849, %v1848
        %v1854 = vpack.c.b16 %v1850, %v1850
        %vm1858 = vcmask 408576
        %v1860 = vsel %vm1858, %v1824, 0
        %v1863 = vsel %vm1858, %v1825, 0
        %vm1865 = vcmask 1040384
        %v1867 = vsel %vm1865, %v1854, 0
        %1869 = vmatpush.bf16.msra.mxu0 0
        %1870 = vmatpush.bf16.msra.mxu0 0
        %1871 = vmatpush.bf16.msra.mxu0 0
        %1872 = vmatpush.bf16.msra.mxu0 0
        %1873 = vmatpush.bf16.msra.mxu0 %v1867
        %1874 = vmatpush.bf16.msra.mxu0 %v1853
        %1875 = vmatpush.bf16.msra.mxu0 %v1852
        %1876 = vmatpush.bf16.msra.mxu0 %v1851
        %1877 = vmatmul.bf16.gmra.mxu0 %v1860
        %v1878 = vpop.f32.mrf.mxu0
        %v1879 = vadd.f32 %v1835, %v1878
        %v1880 = vpop.f32.mrf.mxu0
        %v1881 = vadd.f32 %v1835, %v1880
        %1882 = vmatmul.bf16.gmra.mxu0 %v1863
        %v1883 = vpop.f32.mrf.mxu0
        %v1884 = vadd.f32 %v1835, %v1883
        %v1885 = vpop.f32.mrf.mxu0
        %v1886 = vadd.f32 %v1835, %v1885
        %1887 = vdwg.mxu0
        %v1888 = vmax.f32 %v1879, 0.0
        %v1889 = vmax.f32 %v1881, 0.0
        %v1890 = vmax.f32 %v1884, 0.0
        %v1891 = vmax.f32 %v1886, 0.0
        %v1892 = vpack.c.bf16 %v1889, %v1888
        %v1893 = vpack.c.bf16 %v1891, %v1890
        %v1894 = vld [vmem:[#allocation13] sm:$0xf]
        %v1895 = vld [vmem:[#allocation13 + $0x4] sm:$0xf]
        %v1896 = vld [vmem:[#allocation13 + $0x8] sm:$0x3]
        %v1897 = vld [vmem:[%s14] sm:$0x1]
        %v1899 = vperm.slane %v1897, 0
        %v1904 = vunpack.c.l.b16 %v1894
        %v1905 = vunpack.c.l.b16 %v1895
        %v1906 = vunpack.c.l.b16 %v1896
        %v1907 = vpack.c.b16 %v1905, %v1904
        %v1908 = vpack.c.b16 %v1906, %v1906
        %vm1910 = vcmask 162816
        %v1912 = vsel %vm1910, %v1892, 0
        %v1915 = vsel %vm1910, %v1893, 0
        %v1918 = vsel %vm1797, %v1908, 0
        %1920 = vmatpush.bf16.msra.mxu0 0
        %1921 = vmatpush.bf16.msra.mxu0 0
        %1922 = vmatpush.bf16.msra.mxu0 0
        %1923 = vmatpush.bf16.msra.mxu0 0
        %1924 = vmatpush.bf16.msra.mxu0 0
        %1925 = vmatpush.bf16.msra.mxu0 0
        %1926 = vmatpush.bf16.msra.mxu0 %v1918
        %1927 = vmatpush.bf16.msra.mxu0 %v1907
        %1928 = vmatmul.bf16.gmra.mxu0 %v1912
        %v1929 = vpop.f32.mrf.mxu0
        %v1930 = vadd.f32 %v1899, %v1929
        %v1931 = vpop.f32.mrf.mxu0
        %v1932 = vadd.f32 %v1899, %v1931
        %1933 = vmatmul.bf16.gmra.mxu0 %v1915
        %v1934 = vpop.f32.mrf.mxu0
        %v1935 = vadd.f32 %v1899, %v1934
        %v1936 = vpop.f32.mrf.mxu0
        %v1937 = vadd.f32 %v1899, %v1936
        %1938 = vdwg.mxu0
        %1939 = vst [vmem:[%s594] sm:$0xff] %v1930
        %1940 = vst [vmem:[%s594 + $0x8] sm:$0xff] %v1932
        %1941 = vst [vmem:[%s594 + $0x10] sm:$0xff] %v1935
        %1942 = vst [vmem:[%s594 + $0x18] sm:$0xff] %v1937
        %s1943 = sand.u32 %s361, 1
        %s1944 = scalar_lea.sflag [#allocation4], %s1943
        %s1945 = sand.u32 %s361, 1
        %s1946 = smul.addr %s1945, 32
        %s1947 = scalar_lea.vmem [#allocation14], %s1946
        // Predicated region
        $region109: #{tpu_custom_call.1} parent=79 // pred_check
          %p1948 = pneg %p371
        $region110: #{tpu_custom_call.1} parent=79 // pred_check_branch
          %1950 = sbr.rel (%p1948) target = $region112
        $region111: #{tpu_custom_call.1} parent=79 // pred_region
          %s1951 = smul.u32 4, %s33
          %1953 = vsyncadd %s1944, 0
          %s1954 = smul.addr %s1951, 8
          %s1955 = scalar_lea.hbm %s15, %s1954
          %s1956 = sshll.u32 %s1947, 4
          %s1957 = int_to_ptr.vmem [resolvable:$true] %s1956
          %s1958 = sshll.u32 %s1955, 4
          %s1959 = int_to_ptr.hbm [resolvable:$true] %s1958
          %1964 = dma.vmem_to_hbm [thread:$0]  %s1957, 512, %s1959, %s1944, 128, 128, 8
        $region112: #{tpu_custom_call.1} parent=79 // pred_fallthru
          _
      $region80: #{tpu_custom_call.1} parent=5 // pred_fallthru
        _
      %p1965 = scmp.le.s32.totalorder 2, %s28
      // Predicated region
      $region113: #{tpu_custom_call.1} parent=5 // pred_check
        %p1966 = pneg %p1965
      $region114: #{tpu_custom_call.1} parent=5 // pred_check_branch
        %1968 = sbr.rel (%p1966) target = $region116
      $region115: #{tpu_custom_call.1} parent=5 // pred_region
        %s1969 = ssub.s32 %s28, 2
        // Predicated region
        $region117: #{tpu_custom_call.1} parent=115 // pred_check
          %p1970 = pneg %p377
        $region118: #{tpu_custom_call.1} parent=115 // pred_check_branch
          %1972 = sbr.rel (%p1970) target = $region120
        $region119: #{tpu_custom_call.1} parent=115 // pred_region
          %s1973 = sand.u32 %s362, 1
          %s1974 = scalar_lea.sflag [#allocation4], %s1973
          %s1975 = sand.u32 %s362, 1
          %s1976 = smul.addr %s1975, 32
          %s1977 = scalar_lea.vmem [#allocation14], %s1976
          %1979 = dma.done %s1974, 512
        $region120: #{tpu_custom_call.1} parent=115 // pred_fallthru
          _
      $region116: #{tpu_custom_call.1} parent=5 // pred_fallthru
        _
    $region6: #{tpu_custom_call.1} parent=1 // loop_footer
      %s32 = sadd.s32 1, %s28
    $region7: #{tpu_custom_call.1} parent=1 // loop_footer_branch
      %27 = sbr.rel target = $region3
    $region8: #{tpu_custom_call.1} parent=1 // loop_exit
      _
    %1980 = vsyncpa [#allocation3], 1
    %s1981 = scalar_lea.sflag [#allocation3], 1
    %1982 = vsyncpa %s1981, 1
    %1983 = vsyncpa [#allocation6], 1
    %1984 = vsyncpa [#allocation9], 1
    %1985 = vsyncpa [#allocation12], 1
    %1986 = vsyncpa [#allocation4], 1
    %s1987 = scalar_lea.sflag [#allocation4], 1
    %1988 = vsyncpa %s1987, 1

</llo_original>
